<compile_context>
chip_gen: v6e
topology: v6e:2x2x1
jax: 0.10.0
libtpu: 0.0.40
codegen_flags: <defaults>
</compile_context>

<pallas_src>
import jax
import jax.numpy as jnp
from jax import lax
from jax.experimental import pallas as pl
from jax.experimental.pallas import tpu as pltpu

EPS = 1e-5
LANE = 128


def _round_up(x, m):
    return (x + m - 1) // m * m


def _pick_tile_h(h, desired):
    t = min(desired, h)
    while h % t != 0:
        t -= 1
    return t


def _conv_stats_kernel(x_ref, w_ref, b_ref, conv_ref, sum_ref, ssq_ref):
    # x_ref   : (1, TH+2, W+2, Cp)  halo strip of the zero-padded input
    # w_ref   : (9*Cp, Cp)          im2col weights, rows ordered (ky, kx, in_c)
    # b_ref   : (1, Cp)             conv bias (f32)
    # conv_ref: (1, TH, W, Cp)      f32 conv+bias output tile
    # sum_ref : (1, 1, Cp)          per-tile channel sums (f32)
    # ssq_ref : (1, 1, Cp)          per-tile channel sums of squares (f32)
    xs = x_ref[0]                                   # (TH+2, Wp, Cp), native dtype
    th2, wp, cp = xs.shape
    th, w = th2 - 2, wp - 2

    # im2col: build one (TH*W, 9*Cp) patch block -> a single MXU matmul with K = 9*Cp
    # (amortizes MXU fill/drain once instead of 9 tiny-K matmuls).
    cols = []
    for ky in range(3):
        for kx in range(3):
            cols.append(xs[ky:ky + th, kx:kx + w, :].reshape(th * w, cp))
    patches = jnp.concatenate(cols, axis=1)         # (TH*W, 9*Cp)

    acc = jnp.dot(patches, w_ref[...], preferred_element_type=jnp.float32)
    acc = acc + b_ref[...].astype(jnp.float32)      # (TH*W, Cp), f32

    conv_ref[...] = acc.reshape(1, th, w, cp).astype(conv_ref.dtype)
    sum_ref[...] = jnp.sum(acc, axis=0, keepdims=True).reshape(1, 1, cp)
    ssq_ref[...] = jnp.sum(acc * acc, axis=0, keepdims=True).reshape(1, 1, cp)


def _bn_relu_kernel(conv_ref, scale_ref, shift_ref, o_ref):
    # conv_ref: (1, TH, W, Cp) f32; scale/shift: (1, Cp) f32; o_ref: (1, TH, W, Cp)
    y = conv_ref[...] * scale_ref[...] + shift_ref[...]
    o_ref[...] = jnp.maximum(y, 0.0).astype(o_ref.dtype)


def local_mixer(x_nchw, w_oihw, bias, gamma, beta, *, tile_h=8):
    """x_nchw: [N, C, H, W]; w_oihw: [C, C, 3, 3] (PyTorch conv layout)."""
    N, C, H, W = x_nchw.shape
    Cp = _round_up(C, LANE)            # lane-dense channel axis
    th = _pick_tile_h(H, tile_h)       # H-strip height (divides H)
    n_strips = H // th
    G = N * n_strips                   # flat grid: batch x strips
    Wp = W + 2
    dtype = x_nchw.dtype
    itemsize = jnp.dtype(dtype).itemsize

    # NCHW -> NHWC, zero-pad H/W by 1 (Conv2d padding=1) and channels to Cp.
    x_nhwc = jnp.transpose(x_nchw, (0, 2, 3, 1))
    x_pad = jnp.pad(x_nhwc, ((0, 0), (1, 1), (1, 1), (0, Cp - C)))

    # Overlapping H-strips with a 1-row halo on each side, flattened to a 1-D grid.
    strips = jnp.stack(
        [x_pad[:, i * th: i * th + th + 2] for i in range(n_strips)], axis=1
    ).reshape(G, th + 2, Wp, Cp)

    # [out_c, in_c, ky, kx] -> im2col matrix [(ky, kx, in_c), out_c], channel-padded,
    # cast once here (not per tap inside the kernel).
    w_t = jnp.transpose(w_oihw, (2, 3, 1, 0))                       # (3, 3, C, C)
    w_t = jnp.pad(w_t, ((0, 0), (0, 0), (0, Cp - C), (0, Cp - C)))  # (3, 3, Cp, Cp)
    w_mat = w_t.reshape(9 * Cp, Cp).astype(dtype)

    b_p = jnp.pad(bias, (0, Cp - C)).reshape(1, Cp).astype(jnp.float32)

    flops = 2 * G * th * W * (9 * Cp) * Cp
    bytes_accessed = (
        (G * (th + 2) * Wp * Cp + 9 * Cp * Cp + Cp) * itemsize   # reads
        + (G * th * W * Cp + 2 * G * Cp) * 4                     # f32 writes
    )

    # Pass 1: tiled conv + bias, plus per-tile BN partial sums.
    conv_out, psum, pssq = pl.pallas_call(
        _conv_stats_kernel,
        out_shape=(
            jax.ShapeDtypeStruct((G, th, W, Cp), jnp.float32),
            jax.ShapeDtypeStruct((G, 1, Cp), jnp.float32),
            jax.ShapeDtypeStruct((G, 1, Cp), jnp.float32),
        ),
        grid=(G,),
        in_specs=[
            pl.BlockSpec((1, th + 2, Wp, Cp), lambda g: (g, 0, 0, 0)),
            pl.BlockSpec((9 * Cp, Cp), lambda g: (0, 0)),   # resident across the grid
            pl.BlockSpec((1, Cp), lambda g: (0, 0)),        # resident across the grid
        ],
        out_specs=(
            pl.BlockSpec((1, th, W, Cp), lambda g: (g, 0, 0, 0)),
            pl.BlockSpec((1, 1, Cp), lambda g: (g, 0, 0)),
            pl.BlockSpec((1, 1, Cp), lambda g: (g, 0, 0)),
        ),
        compiler_params=pltpu.CompilerParams(dimension_semantics=("parallel",)),
        cost_estimate=pl.CostEstimate(
            flops=flops, transcendentals=0, bytes_accessed=bytes_accessed),
    )(strips, w_mat, b_p)

    # Finalize GLOBAL training-mode BN statistics from the exact f32 partials
    # (tiny [Cp]-sized math; tiling never changes the statistics).
    m_total = float(N * H * W)
    ch_sum = jnp.sum(psum, axis=0)                    # (1, Cp)
    ch_ssq = jnp.sum(pssq, axis=0)                    # (1, Cp)
    mean = ch_sum / m_total
    var = jnp.maximum(ch_ssq / m_total - mean * mean, 0.0)   # biased variance
    inv = lax.rsqrt(var + EPS)
    g_p = jnp.pad(gamma, (0, Cp - C)).reshape(1, Cp).astype(jnp.float32)
    be_p = jnp.pad(beta, (0, Cp - C)).reshape(1, Cp).astype(jnp.float32)
    scale = g_p * inv
    shift = be_p - mean * scale

    # Pass 2: tiled normalize + affine + ReLU (lane-dense stores, Cp multiple of 128).
    y = pl.pallas_call(
        _bn_relu_kernel,
        out_shape=jax.ShapeDtypeStruct((G, th, W, Cp), dtype),
        grid=(G,),
        in_specs=[
            pl.BlockSpec((1, th, W, Cp), lambda g: (g, 0, 0, 0)),
            pl.BlockSpec((1, Cp), lambda g: (0, 0)),
            pl.BlockSpec((1, Cp), lambda g: (0, 0)),
        ],
        out_specs=pl.BlockSpec((1, th, W, Cp), lambda g: (g, 0, 0, 0)),
        compiler_params=pltpu.CompilerParams(dimension_semantics=("parallel",)),
    )(conv_out, scale, shift)

    # (N*n_strips, th, W, Cp) -> (N, H, W, C) -> NCHW (external PyTorch layout).
    y = y.reshape(N, H, W, Cp)[..., :C]
    return jnp.transpose(y, (0, 3, 1, 2))


def _reference(x_nchw, w_oihw, bias, gamma, beta):
    """Pure-JAX reference of the PyTorch forward (training-mode BN)."""
    y = lax.conv_general_dilated(
        x_nchw.astype(jnp.float32),
        w_oihw.astype(jnp.float32),
        window_strides=(1, 1),
        padding=((1, 1), (1, 1)),
        dimension_numbers=("NCHW", "OIHW", "NCHW"),
    ) + bias.reshape(1, -1, 1, 1)
    mean = jnp.mean(y, axis=(0, 2, 3), keepdims=True)
    var = jnp.mean((y - mean) ** 2, axis=(0, 2, 3), keepdims=True)
    y = (y - mean) * lax.rsqrt(var + EPS)
    y = y * gamma.reshape(1, -1, 1, 1) + beta.reshape(1, -1, 1, 1)
    return jnp.maximum(y, 0.0)


if __name__ == "__main__":
    key = jax.random.PRNGKey(0)
    N, C, H, W = 2, 4, 16, 16

    k_x, k_w, k_b = jax.random.split(key, 3)
    x = jax.random.normal(k_x, (N, C, H, W), dtype=jnp.float32)

    # Deterministic synthetic parameters (shapes match nn.Conv2d(dim,dim,3) / nn.BatchNorm2d(dim)).
    fan_in = C * 3 * 3
    w = jax.random.normal(k_w, (C, C, 3, 3), dtype=jnp.float32) * (1.0 / fan_in) ** 0.5
    b = jax.random.normal(k_b, (C,), dtype=jnp.float32) * 0.1
    gamma = jnp.ones((C,), dtype=jnp.float32)   # BatchNorm2d default weight
    beta = jnp.zeros((C,), dtype=jnp.float32)   # BatchNorm2d default bias

    out = local_mixer(x, w, b, gamma, beta, tile_h=8)
    out = jax.block_until_ready(out)

    ref = jax.block_until_ready(_reference(x, w, b, gamma, beta))
    assert out.shape == (N, C, H, W)
    assert jnp.allclose(out, ref, atol=2e-4, rtol=2e-4), "mismatch vs reference"

    print("KERNEL_OK")
</pallas_src>

<mosaic_0001>
module attributes {stable_mosaic.version = 11 : i64} {
  func.func @_conv_stats_kernel(%arg0: i32, %arg1: memref<1x10x18x128xf32, #tpu.memory_space<vmem>>, %arg2: memref<1152x128xf32, #tpu.memory_space<vmem>>, %arg3: memref<1x128xf32, #tpu.memory_space<vmem>>, %arg4: memref<1x8x16x128xf32, #tpu.memory_space<vmem>>, %arg5: memref<1x1x128xf32, #tpu.memory_space<vmem>>, %arg6: memref<1x1x128xf32, #tpu.memory_space<vmem>>) attributes {dimension_semantics = [#tpu.dimension_semantics<parallel>], iteration_bounds = array<i64: 4>, scalar_prefetch = 0 : i64, scratch_operands = 0 : i64, tpu.core_type = #tpu.core_type<tc>, window_params = [{transform_indices = @transform_0, window_bounds = array<i64: 1, 10, 18, 128>}, {pipeline_mode = #tpu.pipeline_mode<synchronous>, transform_indices = @transform_1, window_bounds = array<i64: 1152, 128>}, {pipeline_mode = #tpu.pipeline_mode<synchronous>, transform_indices = @transform_2, window_bounds = array<i64: 1, 128>}, {transform_indices = @transform_3, window_bounds = array<i64: 1, 8, 16, 128>}, {transform_indices = @transform_4, window_bounds = array<i64: 1, 1, 128>}, {transform_indices = @transform_5, window_bounds = array<i64: 1, 1, 128>}]} {
    %c0 = arith.constant 0 : index
    %c0_0 = arith.constant 0 : index
    %c0_1 = arith.constant 0 : index
    %c0_2 = arith.constant 0 : index
    %0 = vector.load %arg1[%c0, %c0_0, %c0_1, %c0_2] : memref<1x10x18x128xf32, #tpu.memory_space<vmem>>, vector<1x10x18x128xf32>
    %1 = vector.shape_cast %0 : vector<1x10x18x128xf32> to vector<10x18x128xf32>
    %2 = vector.extract_strided_slice %1 {offsets = [0, 0, 0], sizes = [8, 16, 128], strides = [1, 1, 1]} : vector<10x18x128xf32> to vector<8x16x128xf32>
    %3 = vector.shape_cast %2 : vector<8x16x128xf32> to vector<128x128xf32>
    %4 = vector.extract_strided_slice %1 {offsets = [0, 1, 0], sizes = [8, 16, 128], strides = [1, 1, 1]} : vector<10x18x128xf32> to vector<8x16x128xf32>
    %5 = vector.shape_cast %4 : vector<8x16x128xf32> to vector<128x128xf32>
    %6 = vector.extract_strided_slice %1 {offsets = [0, 2, 0], sizes = [8, 16, 128], strides = [1, 1, 1]} : vector<10x18x128xf32> to vector<8x16x128xf32>
    %7 = vector.shape_cast %6 : vector<8x16x128xf32> to vector<128x128xf32>
    %8 = vector.extract_strided_slice %1 {offsets = [1, 0, 0], sizes = [8, 16, 128], strides = [1, 1, 1]} : vector<10x18x128xf32> to vector<8x16x128xf32>
    %9 = vector.shape_cast %8 : vector<8x16x128xf32> to vector<128x128xf32>
    %10 = vector.extract_strided_slice %1 {offsets = [1, 1, 0], sizes = [8, 16, 128], strides = [1, 1, 1]} : vector<10x18x128xf32> to vector<8x16x128xf32>
    %11 = vector.shape_cast %10 : vector<8x16x128xf32> to vector<128x128xf32>
    %12 = vector.extract_strided_slice %1 {offsets = [1, 2, 0], sizes = [8, 16, 128], strides = [1, 1, 1]} : vector<10x18x128xf32> to vector<8x16x128xf32>
    %13 = vector.shape_cast %12 : vector<8x16x128xf32> to vector<128x128xf32>
    %14 = vector.extract_strided_slice %1 {offsets = [2, 0, 0], sizes = [8, 16, 128], strides = [1, 1, 1]} : vector<10x18x128xf32> to vector<8x16x128xf32>
    %15 = vector.shape_cast %14 : vector<8x16x128xf32> to vector<128x128xf32>
    %16 = vector.extract_strided_slice %1 {offsets = [2, 1, 0], sizes = [8, 16, 128], strides = [1, 1, 1]} : vector<10x18x128xf32> to vector<8x16x128xf32>
    %17 = vector.shape_cast %16 : vector<8x16x128xf32> to vector<128x128xf32>
    %18 = vector.extract_strided_slice %1 {offsets = [2, 2, 0], sizes = [8, 16, 128], strides = [1, 1, 1]} : vector<10x18x128xf32> to vector<8x16x128xf32>
    %19 = vector.shape_cast %18 : vector<8x16x128xf32> to vector<128x128xf32>
    %20 = tpu.concatenate %3, %5, %7, %9, %11, %13, %15, %17, %19 in 1 : vector<128x128xf32>, vector<128x128xf32>, vector<128x128xf32>, vector<128x128xf32>, vector<128x128xf32>, vector<128x128xf32>, vector<128x128xf32>, vector<128x128xf32>, vector<128x128xf32> -> vector<128x1152xf32>
    %c0_3 = arith.constant 0 : index
    %c0_4 = arith.constant 0 : index
    %21 = vector.load %arg2[%c0_3, %c0_4] : memref<1152x128xf32, #tpu.memory_space<vmem>>, vector<1152x128xf32>
    %cst = arith.constant dense<0.000000e+00> : vector<128x128xf32>
    %22 = tpu.matmul %20, %21, %cst {dimension_numbers = #tpu.dot_dimension_numbers<[1], [0], [0], [1], [0, 0, 1, 1], [], []>} : vector<128x1152xf32>, vector<1152x128xf32>, vector<128x128xf32> -> vector<128x128xf32>
    %c0_5 = arith.constant 0 : index
    %c0_6 = arith.constant 0 : index
    %23 = vector.load %arg3[%c0_5, %c0_6] : memref<1x128xf32, #tpu.memory_space<vmem>>, vector<1x128xf32>
    %24 = vector.broadcast %23 : vector<1x128xf32> to vector<128x128xf32>
    %25 = arith.addf %22, %24 : vector<128x128xf32>
    %26 = vector.shape_cast %25 : vector<128x128xf32> to vector<1x8x16x128xf32>
    %c0_7 = arith.constant 0 : index
    %c0_8 = arith.constant 0 : index
    %c0_9 = arith.constant 0 : index
    %c0_10 = arith.constant 0 : index
    %27 = vector.load %arg4[%c0_7, %c0_8, %c0_9, %c0_10] : memref<1x8x16x128xf32, #tpu.memory_space<vmem>>, vector<1x8x16x128xf32>
    tpu.vector_store %arg4[%c0_7, %c0_8, %c0_9, %c0_10], %26 {strides = array<i32>} : memref<1x8x16x128xf32, #tpu.memory_space<vmem>>, vector<1x8x16x128xf32>,
    %cst_11 = arith.constant dense<0.000000e+00> : vector<128xf32>
    %28 = vector.multi_reduction <add>, %25, %cst_11 [0] : vector<128x128xf32> to vector<128xf32>
    %29 = vector.shape_cast %28 : vector<128xf32> to vector<1x128xf32>
    %30 = vector.shape_cast %29 : vector<1x128xf32> to vector<1x1x128xf32>
    %c0_12 = arith.constant 0 : index
    %c0_13 = arith.constant 0 : index
    %c0_14 = arith.constant 0 : index
    %31 = vector.load %arg5[%c0_12, %c0_13, %c0_14] : memref<1x1x128xf32, #tpu.memory_space<vmem>>, vector<1x1x128xf32>
    tpu.vector_store %arg5[%c0_12, %c0_13, %c0_14], %30 {strides = array<i32>} : memref<1x1x128xf32, #tpu.memory_space<vmem>>, vector<1x1x128xf32>,
    %32 = arith.mulf %25, %25 : vector<128x128xf32>
    %cst_15 = arith.constant dense<0.000000e+00> : vector<128xf32>
    %33 = vector.multi_reduction <add>, %32, %cst_15 [0] : vector<128x128xf32> to vector<128xf32>
    %34 = vector.shape_cast %33 : vector<128xf32> to vector<1x128xf32>
    %35 = vector.shape_cast %34 : vector<1x128xf32> to vector<1x1x128xf32>
    %c0_16 = arith.constant 0 : index
    %c0_17 = arith.constant 0 : index
    %c0_18 = arith.constant 0 : index
    %36 = vector.load %arg6[%c0_16, %c0_17, %c0_18] : memref<1x1x128xf32, #tpu.memory_space<vmem>>, vector<1x1x128xf32>
    tpu.vector_store %arg6[%c0_16, %c0_17, %c0_18], %35 {strides = array<i32>} : memref<1x1x128xf32, #tpu.memory_space<vmem>>, vector<1x1x128xf32>,
    return
  }
  func.func @transform_0(%arg0: i32) -> (i32, i32, i32, i32) {
    %c0_i32 = arith.constant 0 : i32
    %c0_i32_0 = arith.constant 0 : i32
    %c0_i32_1 = arith.constant 0 : i32
    %c0_i32_2 = arith.constant 0 : i32
    return %arg0, %c0_i32, %c0_i32_0, %c0_i32_1 : i32, i32, i32, i32
  }
  func.func @transform_1(%arg0: i32) -> (i32, i32) {
    %c0_i32 = arith.constant 0 : i32
    %c0_i32_0 = arith.constant 0 : i32
    %c0_i32_1 = arith.constant 0 : i32
    return %c0_i32, %c0_i32_0 : i32, i32
  }
  func.func @transform_2(%arg0: i32) -> (i32, i32) {
    %c0_i32 = arith.constant 0 : i32
    %c0_i32_0 = arith.constant 0 : i32
    %c0_i32_1 = arith.constant 0 : i32
    return %c0_i32, %c0_i32_0 : i32, i32
  }
  func.func @transform_3(%arg0: i32) -> (i32, i32, i32, i32) {
    %c0_i32 = arith.constant 0 : i32
    %c0_i32_0 = arith.constant 0 : i32
    %c0_i32_1 = arith.constant 0 : i32
    %c0_i32_2 = arith.constant 0 : i32
    return %arg0, %c0_i32, %c0_i32_0, %c0_i32_1 : i32, i32, i32, i32
  }
  func.func @transform_4(%arg0: i32) -> (i32, i32, i32) {
    %c0_i32 = arith.constant 0 : i32
    %c0_i32_0 = arith.constant 0 : i32
    %c0_i32_1 = arith.constant 0 : i32
    return %arg0, %c0_i32, %c0_i32_0 : i32, i32, i32
  }
  func.func @transform_5(%arg0: i32) -> (i32, i32, i32) {
    %c0_i32 = arith.constant 0 : i32
    %c0_i32_0 = arith.constant 0 : i32
    %c0_i32_1 = arith.constant 0 : i32
    return %arg0, %c0_i32, %c0_i32_0 : i32, i32, i32
  }
}

</mosaic_0001>

<llo_original>
// kernel: tpu_custom_call.1
$region0: #{tpu_custom_call.1}
  #allocation0 [shape = 'u32[]', space=smem, size = 0x4, offset = 0x4, fixed_abs, tag = 'smem constant byte address 0x4 - core index']
  #allocation1 [shape = 'u32[144,128]{1,0:T(1,128)}', space=vmem, size = 0x12000, scoped, tag = 'internal scratch']
  %s0 = inlined_call_operand.vmem [shape: f32[4,10,18,128], index: 0, kind: input, shape index: {}]
  %s1 = inlined_call_operand.vmem [shape: f32[1152,128], index: 1, kind: input, shape index: {}]
  %s2 = inlined_call_operand.vmem [shape: f32[1,128], index: 2, kind: input, shape index: {}]
  %s3 = inlined_call_operand.hbm [shape: f32[4,8,16,128], index: 3, kind: output, shape index: {0}]
  %s4 = inlined_call_operand.hbm [shape: f32[4,1,128], index: 4, kind: output, shape index: {1}]
  %s5 = inlined_call_operand.hbm [shape: f32[4,1,128], index: 5, kind: output, shape index: {2}]
  %6 = xla_tuple %s3, %s4, %s5
  %s7 = sld [smem:[#allocation0]]
  $region61: #{tpu_custom_call.1} parent=0
    _
  %s9 = ssub.s32 1, %s7
  %s10 = scalar_select 0, %s9, %s7
  $region1: #{tpu_custom_call.1} parent=0
    #allocation2 [shape = 'u8[131072]{0}', space=vmem, size = 0x20000, scoped, tag = 'output window, operand 0']
    #allocation3 [shape = 's32[2]{0}', space=sflag, size = 0x8, scoped, tag = 'scoped memory for tpu_custom_call.1']
    #allocation4 [shape = 'u8[1024]{0}', space=vmem, size = 0x400, scoped, tag = 'output window, operand 1']
    #allocation5 [shape = 's32[2]{0}', space=sflag, size = 0x8, scoped, tag = 'scoped memory for tpu_custom_call.1']
    #allocation6 [shape = 'u8[1024]{0}', space=vmem, size = 0x400, scoped, tag = 'output window, operand 2']
    %11 = vsyncpa [#allocation3], 0
    %s12 = scalar_lea.sflag [#allocation3], 1
    %13 = vsyncpa %s12, 0
    %14 = vsyncpa [#allocation5], 0
    %s15 = scalar_lea.sflag [#allocation5], 1
    %16 = vsyncpa %s15, 0
    loop: start=0, step=1, limit=6
    $region2: #{tpu_custom_call.1} parent=1 // loop_pre_header
      _
    $region3: #{tpu_custom_call.1} parent=1 // loop_header
      %s18 = sphi 0, %s22
      %p19 = scmp.ge.s32.totalorder %s18, 6
      %s28 = sphi 0, %s30
      %s31 = sphi 0, %s28
      %s32 = sphi 0, %s31
      %s48 = sphi 0, %s32
      %s52 = sphi 0, %s52
      %s54 = sphi 0, %s52
      %s55 = sphi 0, %s54
      %s69 = sphi 0, %s55
      %s73 = sphi 0, %s73
      %s75 = sphi 0, %s73
      %s76 = sphi 0, %s75
      %s90 = sphi 0, %s76
      %s96 = sphi 0, %s98
      %s99 = sphi 0, %s96
      %s100 = sphi 0, %s99
      %s116 = sphi 0, %s100
      %s122 = sphi 0, %s124
      %s125 = sphi 0, %s122
      %s126 = sphi 0, %s125
      %s142 = sphi 0, %s126
      %s148 = sphi 0, %s150
      %s151 = sphi 0, %s148
      %s152 = sphi 0, %s151
      %s168 = sphi 0, %s152
    $region4: #{tpu_custom_call.1} parent=1 // loop_header_branch
      %21 = sbr.rel (%p19) target = $region8
    $region5: #{tpu_custom_call.1} parent=1 // loop_body
      %s23 = ssub.s32 %s18, 1
      %s24 = ssub.s32 %s18, 2
      %s25 = sadd.s32 %s18, 1
      %s26 = ssub.s32 %s18, %s25
      %p27 = scmp.eq.s32.totalorder %s26, 0
      %s29 = sadd.s32 %s28, 1
      %s30 = scalar_select %p27, %s28, %s29
      %p33 = pneg %p27
      %p34 = scmp.eq.s32.totalorder %s18, 3
      %p35 = por %p33, %p34
      %p36 = scmp.ne.s32.totalorder %s28, %s31
      %p37 = scmp.eq.s32.totalorder %s18, 0
      %p38 = por %p36, %p37
      %p39 = scmp.ne.s32.totalorder %s28, %s31
      %p40 = scmp.eq.s32.totalorder %s23, 3
      %p41 = por %p39, %p40
      %p42 = scmp.ne.s32.totalorder %s31, %s32
      %p43 = scmp.eq.s32.totalorder %s23, 0
      %p44 = por %p42, %p43
      %p45 = scmp.ne.s32.totalorder %s31, %s32
      %p46 = scmp.eq.s32.totalorder %s24, 3
      %p47 = por %p45, %p46
      %p49 = scmp.ne.s32.totalorder %s32, %s48
      %p50 = scmp.eq.s32.totalorder %s24, 0
      %p51 = por %p49, %p50
      %s53 = sadd.s32 %s52, 1
      %p56 = scmp.eq.s32.totalorder %s18, 3
      %p57 = scmp.ne.s32.totalorder %s52, %s54
      %p58 = scmp.eq.s32.totalorder %s18, 0
      %p59 = por %p57, %p58
      %p60 = scmp.ne.s32.totalorder %s52, %s54
      %p61 = scmp.eq.s32.totalorder %s23, 3
      %p62 = por %p60, %p61
      %p63 = scmp.ne.s32.totalorder %s54, %s55
      %p64 = scmp.eq.s32.totalorder %s23, 0
      %p65 = por %p63, %p64
      %p66 = scmp.ne.s32.totalorder %s54, %s55
      %p67 = scmp.eq.s32.totalorder %s24, 3
      %p68 = por %p66, %p67
      %p70 = scmp.ne.s32.totalorder %s55, %s69
      %p71 = scmp.eq.s32.totalorder %s24, 0
      %p72 = por %p70, %p71
      %s74 = sadd.s32 %s73, 1
      %p77 = scmp.eq.s32.totalorder %s18, 3
      %p78 = scmp.ne.s32.totalorder %s73, %s75
      %p79 = scmp.eq.s32.totalorder %s18, 0
      %p80 = por %p78, %p79
      %p81 = scmp.ne.s32.totalorder %s73, %s75
      %p82 = scmp.eq.s32.totalorder %s23, 3
      %p83 = por %p81, %p82
      %p84 = scmp.ne.s32.totalorder %s75, %s76
      %p85 = scmp.eq.s32.totalorder %s23, 0
      %p86 = por %p84, %p85
      %p87 = scmp.ne.s32.totalorder %s75, %s76
      %p88 = scmp.eq.s32.totalorder %s24, 3
      %p89 = por %p87, %p88
      %p91 = scmp.ne.s32.totalorder %s76, %s90
      %p92 = scmp.eq.s32.totalorder %s24, 0
      %p93 = por %p91, %p92
      %s94 = ssub.s32 %s18, %s25
      %p95 = scmp.eq.s32.totalorder %s94, 0
      %s97 = sadd.s32 %s96, 1
      %s98 = scalar_select %p95, %s96, %s97
      %p101 = pneg %p95
      %p102 = scmp.eq.s32.totalorder %s18, 3
      %p103 = por %p101, %p102
      %p104 = scmp.ne.s32.totalorder %s96, %s99
      %p105 = scmp.eq.s32.totalorder %s18, 0
      %p106 = por %p104, %p105
      %p107 = scmp.ne.s32.totalorder %s96, %s99
      %p108 = scmp.eq.s32.totalorder %s23, 3
      %p109 = por %p107, %p108
      %p110 = scmp.ne.s32.totalorder %s99, %s100
      %p111 = scmp.eq.s32.totalorder %s23, 0
      %p112 = por %p110, %p111
      %p113 = scmp.ne.s32.totalorder %s99, %s100
      %p114 = scmp.eq.s32.totalorder %s24, 3
      %p115 = por %p113, %p114
      %p117 = scmp.ne.s32.totalorder %s100, %s116
      %p118 = scmp.eq.s32.totalorder %s24, 0
      %p119 = por %p117, %p118
      %s120 = ssub.s32 %s18, %s25
      %p121 = scmp.eq.s32.totalorder %s120, 0
      %s123 = sadd.s32 %s122, 1
      %s124 = scalar_select %p121, %s122, %s123
      %p127 = pneg %p121
      %p128 = scmp.eq.s32.totalorder %s18, 3
      %p129 = por %p127, %p128
      %p130 = scmp.ne.s32.totalorder %s122, %s125
      %p131 = scmp.eq.s32.totalorder %s18, 0
      %p132 = por %p130, %p131
      %p133 = scmp.ne.s32.totalorder %s122, %s125
      %p134 = scmp.eq.s32.totalorder %s23, 3
      %p135 = por %p133, %p134
      %p136 = scmp.ne.s32.totalorder %s125, %s126
      %p137 = scmp.eq.s32.totalorder %s23, 0
      %p138 = por %p136, %p137
      %p139 = scmp.ne.s32.totalorder %s125, %s126
      %p140 = scmp.eq.s32.totalorder %s24, 3
      %p141 = por %p139, %p140
      %p143 = scmp.ne.s32.totalorder %s126, %s142
      %p144 = scmp.eq.s32.totalorder %s24, 0
      %p145 = por %p143, %p144
      %s146 = ssub.s32 %s18, %s25
      %p147 = scmp.eq.s32.totalorder %s146, 0
      %s149 = sadd.s32 %s148, 1
      %s150 = scalar_select %p147, %s148, %s149
      %p153 = pneg %p147
      %p154 = scmp.eq.s32.totalorder %s18, 3
      %p155 = por %p153, %p154
      %p156 = scmp.ne.s32.totalorder %s148, %s151
      %p157 = scmp.eq.s32.totalorder %s18, 0
      %p158 = por %p156, %p157
      %p159 = scmp.ne.s32.totalorder %s148, %s151
      %p160 = scmp.eq.s32.totalorder %s23, 3
      %p161 = por %p159, %p160
      %p162 = scmp.ne.s32.totalorder %s151, %s152
      %p163 = scmp.eq.s32.totalorder %s23, 0
      %p164 = por %p162, %p163
      %p165 = scmp.ne.s32.totalorder %s151, %s152
      %p166 = scmp.eq.s32.totalorder %s24, 3
      %p167 = por %p165, %p166
      %p169 = scmp.ne.s32.totalorder %s152, %s168
      %p170 = scmp.eq.s32.totalorder %s24, 0
      %p171 = por %p169, %p170
      %p172 = scmp.le.s32.totalorder 1, %s18
      %p173 = scmp.lt.s32.totalorder %s18, 5
      %p174 = pnand %p172, %p173
      %p175 = pneg %p174
      // Predicated region
      $region9: #{tpu_custom_call.1} parent=5 // pred_check
        _
      $region10: #{tpu_custom_call.1} parent=5 // pred_check_branch
        %177 = sbr.rel (%p174) target = $region12
      $region11: #{tpu_custom_call.1} parent=5 // pred_region
        %s178 = ssub.s32 %s18, 1
        // Predicated region
        $region13: #{tpu_custom_call.1} parent=11 // pred_check
          %p179 = pneg %p65
        $region14: #{tpu_custom_call.1} parent=11 // pred_check_branch
          %181 = sbr.rel (%p179) target = $region16
        $region15: #{tpu_custom_call.1} parent=11 // pred_region
          _
        $region16: #{tpu_custom_call.1} parent=11 // pred_fallthru
          _
        // Predicated region
        $region17: #{tpu_custom_call.1} parent=11 // pred_check
          %p182 = pneg %p86
        $region18: #{tpu_custom_call.1} parent=11 // pred_check_branch
          %184 = sbr.rel (%p182) target = $region20
        $region19: #{tpu_custom_call.1} parent=11 // pred_region
          _
        $region20: #{tpu_custom_call.1} parent=11 // pred_fallthru
          _
      $region12: #{tpu_custom_call.1} parent=5 // pred_fallthru
        _
      %p185 = scmp.lt.s32.totalorder %s18, 4
      // Predicated region
      $region21: #{tpu_custom_call.1} parent=5 // pred_check
        %p186 = pneg %p185
      $region22: #{tpu_custom_call.1} parent=5 // pred_check_branch
        %188 = sbr.rel (%p186) target = $region24
      $region23: #{tpu_custom_call.1} parent=5 // pred_region
        // Predicated region
        $region25: #{tpu_custom_call.1} parent=23 // pred_check
          %p189 = pneg %p38
        $region26: #{tpu_custom_call.1} parent=23 // pred_check_branch
          %191 = sbr.rel (%p189) target = $region28
        $region27: #{tpu_custom_call.1} parent=23 // pred_region
          %p192 = scmp.lt.s32.totalorder %s18, 3
          %s193 = scalar_select %p192, %s18, 3
          %s194 = smul.addr %s193, 30
          %s195 = smul.addr %s194, 8
          %s196 = scalar_lea.vmem %s0, %s195
        $region28: #{tpu_custom_call.1} parent=23 // pred_fallthru
          _
      $region24: #{tpu_custom_call.1} parent=5 // pred_fallthru
        _
      %p197 = scmp.le.s32.totalorder 1, %s18
      %p198 = scmp.lt.s32.totalorder %s18, 5
      %p199 = pnand %p197, %p198
      %p200 = pneg %p199
      // Predicated region
      $region29: #{tpu_custom_call.1} parent=5 // pred_check
        _
      $region30: #{tpu_custom_call.1} parent=5 // pred_check_branch
        %202 = sbr.rel (%p199) target = $region32
      $region31: #{tpu_custom_call.1} parent=5 // pred_region
        %s203 = ssub.s32 %s18, 1
        %p204 = scmp.lt.s32.totalorder %s23, 3
        %s205 = scalar_select %p204, %s23, 3
        %s206 = smul.addr %s205, 30
        %s207 = smul.addr %s206, 8
        %s208 = scalar_lea.vmem %s0, %s207
        %p209 = pneg %p44
        %p210 = pneg %p41
        %p211 = pneg %p65
        %p212 = pneg %p62
        %p213 = pneg %p86
        %p214 = pneg %p83
        %p215 = pneg %p112
        %p216 = pneg %p109
        %s217 = sand.u32 %s99, 1
        %s218 = scalar_lea.sflag [#allocation3], %s217
        %s219 = sand.u32 %s99, 1
        %s220 = smul.addr %s219, 128
        %s221 = scalar_lea.vmem [#allocation2], %s220
        %p222 = pneg %p138
        %p223 = pneg %p135
        %s224 = sand.u32 %s23, 1
        %s225 = scalar_lea.sflag [#allocation5], %s224
        %s226 = sand.u32 %s125, 1
        %s227 = scalar_lea.vmem [#allocation4], %s226
        %p228 = pneg %p164
        %p229 = pneg %p161
        %s230 = sand.u32 %s23, 1
        %s231 = scalar_lea.sflag [#allocation5], %s230
        %s232 = sand.u32 %s151, 1
        %s233 = scalar_lea.vmem [#allocation6], %s232
        %p234 = scmp.lt.s32.totalorder %s23, 3
        %s235 = scalar_select %p234, %s23, 3
        %s236 = smul.addr %s235, 30
        %s237 = smul.addr %s236, 8
        %s238 = scalar_lea.vmem %s0, %s237
        %v239 = vld [vmem:[%s238] sm:$0xff]
        %v240 = vld [vmem:[%s238 + $0x8] sm:$0xff]
        %v241 = vld [vmem:[%s238 + $0x10] sm:$0x3]
        %v242 = vld [vmem:[%s238 + $0x18] sm:$0xff]
        %v243 = vld [vmem:[%s238 + $0x20] sm:$0xff]
        %v244 = vld [vmem:[%s238 + $0x28] sm:$0x3]
        %v245 = vld [vmem:[%s238 + $0x30] sm:$0xff]
        %v246 = vld [vmem:[%s238 + $0x38] sm:$0xff]
        %v247 = vld [vmem:[%s238 + $0x40] sm:$0x3]
        %v248 = vld [vmem:[%s238 + $0x48] sm:$0xff]
        %v249 = vld [vmem:[%s238 + $0x50] sm:$0xff]
        %v250 = vld [vmem:[%s238 + $0x58] sm:$0x3]
        %v251 = vld [vmem:[%s238 + $0x60] sm:$0xff]
        %v252 = vld [vmem:[%s238 + $0x68] sm:$0xff]
        %v253 = vld [vmem:[%s238 + $0x70] sm:$0x3]
        %v254 = vld [vmem:[%s238 + $0x78] sm:$0xff]
        %v255 = vld [vmem:[%s238 + $0x80] sm:$0xff]
        %v256 = vld [vmem:[%s238 + $0x88] sm:$0x3]
        %v257 = vld [vmem:[%s238 + $0x90] sm:$0xff]
        %v258 = vld [vmem:[%s238 + $0x98] sm:$0xff]
        %v259 = vld [vmem:[%s238 + $0xa0] sm:$0x3]
        %v260 = vld [vmem:[%s238 + $0xa8] sm:$0xff]
        %v261 = vld [vmem:[%s238 + $0xb0] sm:$0xff]
        %v262 = vld [vmem:[%s238 + $0xb8] sm:$0x3]
        %v263 = vld [vmem:[%s238 + $0xc0] sm:$0xff]
        %v264 = vld [vmem:[%s238 + $0xc8] sm:$0xff]
        %v265 = vld [vmem:[%s238 + $0xd0] sm:$0x3]
        %v266 = vld [vmem:[%s238 + $0xd8] sm:$0xff]
        %v267 = vld [vmem:[%s238 + $0xe0] sm:$0xff]
        %v268 = vld [vmem:[%s238 + $0xe8] sm:$0x3]
        %vm293 = vcmask 1046528
        %v294 = vrot.slane %v239, 1
        %v295 = vrot.slane %v240, 1
        %v296 = vsel %vm293, %v294, %v295
        %v297 = vrot.slane %v241, 1
        %v298 = vsel %vm293, %v295, %v297
        %v299 = vrot.slane %v242, 1
        %v300 = vrot.slane %v243, 1
        %v301 = vsel %vm293, %v299, %v300
        %v302 = vrot.slane %v244, 1
        %v303 = vsel %vm293, %v300, %v302
        %v304 = vrot.slane %v245, 1
        %v305 = vrot.slane %v246, 1
        %v306 = vsel %vm293, %v304, %v305
        %v307 = vrot.slane %v247, 1
        %v308 = vsel %vm293, %v305, %v307
        %v309 = vrot.slane %v248, 1
        %v310 = vrot.slane %v249, 1
        %v311 = vsel %vm293, %v309, %v310
        %v312 = vrot.slane %v250, 1
        %v313 = vsel %vm293, %v310, %v312
        %v314 = vrot.slane %v251, 1
        %v315 = vrot.slane %v252, 1
        %v316 = vsel %vm293, %v314, %v315
        %v317 = vrot.slane %v253, 1
        %v318 = vsel %vm293, %v315, %v317
        %v319 = vrot.slane %v254, 1
        %v320 = vrot.slane %v255, 1
        %v321 = vsel %vm293, %v319, %v320
        %v322 = vrot.slane %v256, 1
        %v323 = vsel %vm293, %v320, %v322
        %v324 = vrot.slane %v257, 1
        %v325 = vrot.slane %v258, 1
        %v326 = vsel %vm293, %v324, %v325
        %v327 = vrot.slane %v259, 1
        %v328 = vsel %vm293, %v325, %v327
        %v329 = vrot.slane %v260, 1
        %v330 = vrot.slane %v261, 1
        %v331 = vsel %vm293, %v329, %v330
        %v332 = vrot.slane %v262, 1
        %v333 = vsel %vm293, %v330, %v332
        %vm350 = vcmask 1045504
        %v351 = vrot.slane %v239, 2
        %v352 = vrot.slane %v240, 2
        %v353 = vsel %vm350, %v351, %v352
        %v354 = vrot.slane %v241, 2
        %v355 = vsel %vm350, %v352, %v354
        %v356 = vrot.slane %v242, 2
        %v357 = vrot.slane %v243, 2
        %v358 = vsel %vm350, %v356, %v357
        %v359 = vrot.slane %v244, 2
        %v360 = vsel %vm350, %v357, %v359
        %v361 = vrot.slane %v245, 2
        %v362 = vrot.slane %v246, 2
        %v363 = vsel %vm350, %v361, %v362
        %v364 = vrot.slane %v247, 2
        %v365 = vsel %vm350, %v362, %v364
        %v366 = vrot.slane %v248, 2
        %v367 = vrot.slane %v249, 2
        %v368 = vsel %vm350, %v366, %v367
        %v369 = vrot.slane %v250, 2
        %v370 = vsel %vm350, %v367, %v369
        %v371 = vrot.slane %v251, 2
        %v372 = vrot.slane %v252, 2
        %v373 = vsel %vm350, %v371, %v372
        %v374 = vrot.slane %v253, 2
        %v375 = vsel %vm350, %v372, %v374
        %v376 = vrot.slane %v254, 2
        %v377 = vrot.slane %v255, 2
        %v378 = vsel %vm350, %v376, %v377
        %v379 = vrot.slane %v256, 2
        %v380 = vsel %vm350, %v377, %v379
        %v381 = vrot.slane %v257, 2
        %v382 = vrot.slane %v258, 2
        %v383 = vsel %vm350, %v381, %v382
        %v384 = vrot.slane %v259, 2
        %v385 = vsel %vm350, %v382, %v384
        %v386 = vrot.slane %v260, 2
        %v387 = vrot.slane %v261, 2
        %v388 = vsel %vm350, %v386, %v387
        %v389 = vrot.slane %v262, 2
        %v390 = vsel %vm350, %v387, %v389
        %v410 = vrot.slane %v263, 1
        %v411 = vrot.slane %v264, 1
        %v412 = vsel %vm293, %v410, %v411
        %v413 = vrot.slane %v265, 1
        %v414 = vsel %vm293, %v411, %v413
        %v417 = vrot.slane %v263, 2
        %v418 = vrot.slane %v264, 2
        %v419 = vsel %vm350, %v417, %v418
        %v420 = vrot.slane %v265, 2
        %v421 = vsel %vm350, %v418, %v420
        %v427 = vrot.slane %v266, 1
        %v428 = vrot.slane %v267, 1
        %v429 = vsel %vm293, %v427, %v428
        %v430 = vrot.slane %v268, 1
        %v431 = vsel %vm293, %v428, %v430
        %v434 = vrot.slane %v266, 2
        %v435 = vrot.slane %v267, 2
        %v436 = vsel %vm350, %v434, %v435
        %v437 = vrot.slane %v268, 2
        %v438 = vsel %vm350, %v435, %v437
        %v441 = vld [vmem:[%s1] sm:$0xff]
        %v442 = vld [vmem:[%s1 + $0x8] sm:$0xff]
        %v443 = vld [vmem:[%s1 + $0x10] sm:$0xff]
        %v444 = vld [vmem:[%s1 + $0x18] sm:$0xff]
        %v445 = vld [vmem:[%s1 + $0x20] sm:$0xff]
        %v446 = vld [vmem:[%s1 + $0x28] sm:$0xff]
        %v447 = vld [vmem:[%s1 + $0x30] sm:$0xff]
        %v448 = vld [vmem:[%s1 + $0x38] sm:$0xff]
        %v449 = vld [vmem:[%s1 + $0x40] sm:$0xff]
        %v450 = vld [vmem:[%s1 + $0x48] sm:$0xff]
        %v451 = vld [vmem:[%s1 + $0x50] sm:$0xff]
        %v452 = vld [vmem:[%s1 + $0x58] sm:$0xff]
        %v453 = vld [vmem:[%s1 + $0x60] sm:$0xff]
        %v454 = vld [vmem:[%s1 + $0x68] sm:$0xff]
        %v455 = vld [vmem:[%s1 + $0x70] sm:$0xff]
        %v456 = vld [vmem:[%s1 + $0x78] sm:$0xff]
        %v457 = vld [vmem:[%s1 + $0x80] sm:$0xff]
        %v458 = vld [vmem:[%s1 + $0x88] sm:$0xff]
        %v459 = vld [vmem:[%s1 + $0x90] sm:$0xff]
        %v460 = vld [vmem:[%s1 + $0x98] sm:$0xff]
        %v461 = vld [vmem:[%s1 + $0xa0] sm:$0xff]
        %v462 = vld [vmem:[%s1 + $0xa8] sm:$0xff]
        %v463 = vld [vmem:[%s1 + $0xb0] sm:$0xff]
        %v464 = vld [vmem:[%s1 + $0xb8] sm:$0xff]
        %v465 = vld [vmem:[%s1 + $0xc0] sm:$0xff]
        %v466 = vld [vmem:[%s1 + $0xc8] sm:$0xff]
        %v467 = vld [vmem:[%s1 + $0xd0] sm:$0xff]
        %v468 = vld [vmem:[%s1 + $0xd8] sm:$0xff]
        %v469 = vld [vmem:[%s1 + $0xe0] sm:$0xff]
        %v470 = vld [vmem:[%s1 + $0xe8] sm:$0xff]
        %v471 = vld [vmem:[%s1 + $0xf0] sm:$0xff]
        %v472 = vld [vmem:[%s1 + $0xf8] sm:$0xff]
        %v473 = vld [vmem:[%s1 + $0x100] sm:$0xff]
        %v474 = vld [vmem:[%s1 + $0x108] sm:$0xff]
        %v475 = vld [vmem:[%s1 + $0x110] sm:$0xff]
        %v476 = vld [vmem:[%s1 + $0x118] sm:$0xff]
        %v477 = vld [vmem:[%s1 + $0x120] sm:$0xff]
        %v478 = vld [vmem:[%s1 + $0x128] sm:$0xff]
        %v479 = vld [vmem:[%s1 + $0x130] sm:$0xff]
        %v480 = vld [vmem:[%s1 + $0x138] sm:$0xff]
        %v481 = vld [vmem:[%s1 + $0x140] sm:$0xff]
        %v482 = vld [vmem:[%s1 + $0x148] sm:$0xff]
        %v483 = vld [vmem:[%s1 + $0x150] sm:$0xff]
        %v484 = vld [vmem:[%s1 + $0x158] sm:$0xff]
        %v485 = vld [vmem:[%s1 + $0x160] sm:$0xff]
        %v486 = vld [vmem:[%s1 + $0x168] sm:$0xff]
        %v487 = vld [vmem:[%s1 + $0x170] sm:$0xff]
        %v488 = vld [vmem:[%s1 + $0x178] sm:$0xff]
        %v489 = vld [vmem:[%s1 + $0x180] sm:$0xff]
        %v490 = vld [vmem:[%s1 + $0x188] sm:$0xff]
        %v491 = vld [vmem:[%s1 + $0x190] sm:$0xff]
        %v492 = vld [vmem:[%s1 + $0x198] sm:$0xff]
        %v493 = vld [vmem:[%s1 + $0x1a0] sm:$0xff]
        %v494 = vld [vmem:[%s1 + $0x1a8] sm:$0xff]
        %v495 = vld [vmem:[%s1 + $0x1b0] sm:$0xff]
        %v496 = vld [vmem:[%s1 + $0x1b8] sm:$0xff]
        %v497 = vld [vmem:[%s1 + $0x1c0] sm:$0xff]
        %v498 = vld [vmem:[%s1 + $0x1c8] sm:$0xff]
        %v499 = vld [vmem:[%s1 + $0x1d0] sm:$0xff]
        %v500 = vld [vmem:[%s1 + $0x1d8] sm:$0xff]
        %v501 = vld [vmem:[%s1 + $0x1e0] sm:$0xff]
        %v502 = vld [vmem:[%s1 + $0x1e8] sm:$0xff]
        %v503 = vld [vmem:[%s1 + $0x1f0] sm:$0xff]
        %v504 = vld [vmem:[%s1 + $0x1f8] sm:$0xff]
        %v505 = vld [vmem:[%s1 + $0x200] sm:$0xff]
        %v506 = vld [vmem:[%s1 + $0x208] sm:$0xff]
        %v507 = vld [vmem:[%s1 + $0x210] sm:$0xff]
        %v508 = vld [vmem:[%s1 + $0x218] sm:$0xff]
        %v509 = vld [vmem:[%s1 + $0x220] sm:$0xff]
        %v510 = vld [vmem:[%s1 + $0x228] sm:$0xff]
        %v511 = vld [vmem:[%s1 + $0x230] sm:$0xff]
        %v512 = vld [vmem:[%s1 + $0x238] sm:$0xff]
        %v513 = vld [vmem:[%s1 + $0x240] sm:$0xff]
        %v514 = vld [vmem:[%s1 + $0x248] sm:$0xff]
        %v515 = vld [vmem:[%s1 + $0x250] sm:$0xff]
        %v516 = vld [vmem:[%s1 + $0x258] sm:$0xff]
        %v517 = vld [vmem:[%s1 + $0x260] sm:$0xff]
        %v518 = vld [vmem:[%s1 + $0x268] sm:$0xff]
        %v519 = vld [vmem:[%s1 + $0x270] sm:$0xff]
        %v520 = vld [vmem:[%s1 + $0x278] sm:$0xff]
        %v521 = vld [vmem:[%s1 + $0x280] sm:$0xff]
        %v522 = vld [vmem:[%s1 + $0x288] sm:$0xff]
        %v523 = vld [vmem:[%s1 + $0x290] sm:$0xff]
        %v524 = vld [vmem:[%s1 + $0x298] sm:$0xff]
        %v525 = vld [vmem:[%s1 + $0x2a0] sm:$0xff]
        %v526 = vld [vmem:[%s1 + $0x2a8] sm:$0xff]
        %v527 = vld [vmem:[%s1 + $0x2b0] sm:$0xff]
        %v528 = vld [vmem:[%s1 + $0x2b8] sm:$0xff]
        %v529 = vld [vmem:[%s1 + $0x2c0] sm:$0xff]
        %v530 = vld [vmem:[%s1 + $0x2c8] sm:$0xff]
        %v531 = vld [vmem:[%s1 + $0x2d0] sm:$0xff]
        %v532 = vld [vmem:[%s1 + $0x2d8] sm:$0xff]
        %v533 = vld [vmem:[%s1 + $0x2e0] sm:$0xff]
        %v534 = vld [vmem:[%s1 + $0x2e8] sm:$0xff]
        %v535 = vld [vmem:[%s1 + $0x2f0] sm:$0xff]
        %v536 = vld [vmem:[%s1 + $0x2f8] sm:$0xff]
        %v537 = vld [vmem:[%s1 + $0x300] sm:$0xff]
        %v538 = vld [vmem:[%s1 + $0x308] sm:$0xff]
        %v539 = vld [vmem:[%s1 + $0x310] sm:$0xff]
        %v540 = vld [vmem:[%s1 + $0x318] sm:$0xff]
        %v541 = vld [vmem:[%s1 + $0x320] sm:$0xff]
        %v542 = vld [vmem:[%s1 + $0x328] sm:$0xff]
        %v543 = vld [vmem:[%s1 + $0x330] sm:$0xff]
        %v544 = vld [vmem:[%s1 + $0x338] sm:$0xff]
        %v545 = vld [vmem:[%s1 + $0x340] sm:$0xff]
        %v546 = vld [vmem:[%s1 + $0x348] sm:$0xff]
        %v547 = vld [vmem:[%s1 + $0x350] sm:$0xff]
        %v548 = vld [vmem:[%s1 + $0x358] sm:$0xff]
        %v549 = vld [vmem:[%s1 + $0x360] sm:$0xff]
        %v550 = vld [vmem:[%s1 + $0x368] sm:$0xff]
        %v551 = vld [vmem:[%s1 + $0x370] sm:$0xff]
        %v552 = vld [vmem:[%s1 + $0x378] sm:$0xff]
        %v553 = vld [vmem:[%s1 + $0x380] sm:$0xff]
        %v554 = vld [vmem:[%s1 + $0x388] sm:$0xff]
        %v555 = vld [vmem:[%s1 + $0x390] sm:$0xff]
        %v556 = vld [vmem:[%s1 + $0x398] sm:$0xff]
        %v557 = vld [vmem:[%s1 + $0x3a0] sm:$0xff]
        %v558 = vld [vmem:[%s1 + $0x3a8] sm:$0xff]
        %v559 = vld [vmem:[%s1 + $0x3b0] sm:$0xff]
        %v560 = vld [vmem:[%s1 + $0x3b8] sm:$0xff]
        %v561 = vld [vmem:[%s1 + $0x3c0] sm:$0xff]
        %v562 = vld [vmem:[%s1 + $0x3c8] sm:$0xff]
        %v563 = vld [vmem:[%s1 + $0x3d0] sm:$0xff]
        %v564 = vld [vmem:[%s1 + $0x3d8] sm:$0xff]
        %v565 = vld [vmem:[%s1 + $0x3e0] sm:$0xff]
        %v566 = vld [vmem:[%s1 + $0x3e8] sm:$0xff]
        %v567 = vld [vmem:[%s1 + $0x3f0] sm:$0xff]
        %v568 = vld [vmem:[%s1 + $0x3f8] sm:$0xff]
        %v569 = vld [vmem:[%s1 + $0x400] sm:$0xff]
        %v570 = vld [vmem:[%s1 + $0x408] sm:$0xff]
        %v571 = vld [vmem:[%s1 + $0x410] sm:$0xff]
        %v572 = vld [vmem:[%s1 + $0x418] sm:$0xff]
        %v573 = vld [vmem:[%s1 + $0x420] sm:$0xff]
        %v574 = vld [vmem:[%s1 + $0x428] sm:$0xff]
        %v575 = vld [vmem:[%s1 + $0x430] sm:$0xff]
        %v576 = vld [vmem:[%s1 + $0x438] sm:$0xff]
        %v577 = vld [vmem:[%s1 + $0x440] sm:$0xff]
        %v578 = vld [vmem:[%s1 + $0x448] sm:$0xff]
        %v579 = vld [vmem:[%s1 + $0x450] sm:$0xff]
        %v580 = vld [vmem:[%s1 + $0x458] sm:$0xff]
        %v581 = vld [vmem:[%s1 + $0x460] sm:$0xff]
        %v582 = vld [vmem:[%s1 + $0x468] sm:$0xff]
        %v583 = vld [vmem:[%s1 + $0x470] sm:$0xff]
        %v584 = vld [vmem:[%s1 + $0x478] sm:$0xff]
        %v585 = vld [vmem:[%s2] sm:$0x1]
        %v587 = vlaneseq
        %v588 = vshrl.u32 %v587, 7
        %v589 = vsub.s32 0, %v588
        %v590 = vrot.slane %v585, %v589
        %592 = vmatprep.subr.mxu0 0.0
        %593 = vmatpush1.msra.mxu0 %v456
        %594 = vmatprep.subr.mxu0 0.0
        %595 = vmatpush1.msra.mxu0 %v455
        %596 = vmatprep.subr.mxu0 0.0
        %597 = vmatpush1.msra.mxu0 %v454
        %598 = vmatprep.subr.mxu0 0.0
        %599 = vmatpush1.msra.mxu0 %v453
        %600 = vmatprep.subr.mxu0 0.0
        %601 = vmatpush1.msra.mxu0 %v452
        %602 = vmatprep.subr.mxu0 0.0
        %603 = vmatpush1.msra.mxu0 %v451
        %604 = vmatprep.subr.mxu0 0.0
        %605 = vmatpush1.msra.mxu0 %v450
        %606 = vmatprep.subr.mxu0 0.0
        %607 = vmatpush1.msra.mxu0 %v449
        %608 = vmatprep.subr.mxu0 0.0
        %609 = vmatpush1.msra.mxu0 %v448
        %610 = vmatprep.subr.mxu0 0.0
        %611 = vmatpush1.msra.mxu0 %v447
        %612 = vmatprep.subr.mxu0 0.0
        %613 = vmatpush1.msra.mxu0 %v446
        %614 = vmatprep.subr.mxu0 0.0
        %615 = vmatpush1.msra.mxu0 %v445
        %616 = vmatprep.subr.mxu0 0.0
        %617 = vmatpush1.msra.mxu0 %v444
        %618 = vmatprep.subr.mxu0 0.0
        %619 = vmatpush1.msra.mxu0 %v443
        %620 = vmatprep.subr.mxu0 0.0
        %621 = vmatpush1.msra.mxu0 %v442
        %622 = vmatprep.subr.mxu0 0.0
        %623 = vmatpush1.msra.mxu0 %v441
        %624 = vmatprep.subr.mxu0 0.0
        %625 = vmatpush2.msra.mxu0 %v472
        %626 = vmatprep.subr.mxu0 0.0
        %627 = vmatpush2.msra.mxu0 %v471
        %628 = vmatprep.subr.mxu0 0.0
        %629 = vmatpush2.msra.mxu0 %v470
        %630 = vmatprep.subr.mxu0 0.0
        %631 = vmatpush2.msra.mxu0 %v469
        %632 = vmatprep.subr.mxu0 0.0
        %633 = vmatpush2.msra.mxu0 %v468
        %634 = vmatprep.subr.mxu0 0.0
        %635 = vmatpush2.msra.mxu0 %v467
        %636 = vmatprep.subr.mxu0 0.0
        %637 = vmatpush2.msra.mxu0 %v466
        %638 = vmatprep.subr.mxu0 0.0
        %639 = vmatpush2.msra.mxu0 %v465
        %640 = vmatprep.subr.mxu0 0.0
        %641 = vmatpush2.msra.mxu0 %v464
        %642 = vmatprep.subr.mxu0 0.0
        %643 = vmatpush2.msra.mxu0 %v463
        %644 = vmatprep.subr.mxu0 0.0
        %645 = vmatpush2.msra.mxu0 %v462
        %646 = vmatprep.subr.mxu0 0.0
        %647 = vmatpush2.msra.mxu0 %v461
        %648 = vmatprep.subr.mxu0 0.0
        %649 = vmatpush2.msra.mxu0 %v460
        %650 = vmatprep.subr.mxu0 0.0
        %651 = vmatpush2.msra.mxu0 %v459
        %652 = vmatprep.subr.mxu0 0.0
        %653 = vmatpush2.msra.mxu0 %v458
        %654 = vmatprep.subr.mxu0 0.0
        %655 = vmatpush2.msra.mxu0 %v457
        %656 = vmatprep.mubr.f32.mxu0 %v296
        %657 = vmatmul.mubr.f32.gmra.mxu0 %v239
        %v658 = vpop.f32.mrf.mxu0
        %v659 = vadd.f32 %v590, %v658
        %v660 = vpop.f32.mrf.mxu0
        %661 = vmatprep.mubr.f32.mxu0 %v298
        %662 = vmatmul.mubr.f32.gmra.mxu0 %v240
        %v663 = vpop.f32.mrf.mxu0
        %v664 = vadd.f32 %v590, %v663
        %v665 = vpop.f32.mrf.mxu0
        %666 = vmatprep.mubr.f32.mxu0 %v301
        %667 = vmatmul.mubr.f32.gmra.mxu0 %v242
        %v668 = vpop.f32.mrf.mxu0
        %v669 = vadd.f32 %v590, %v668
        %v670 = vpop.f32.mrf.mxu0
        %671 = vmatprep.mubr.f32.mxu0 %v303
        %672 = vmatmul.mubr.f32.gmra.mxu0 %v243
        %v673 = vpop.f32.mrf.mxu0
        %v674 = vadd.f32 %v590, %v673
        %v675 = vpop.f32.mrf.mxu0
        %676 = vmatprep.mubr.f32.mxu0 %v306
        %677 = vmatmul.mubr.f32.gmra.mxu0 %v245
        %v678 = vpop.f32.mrf.mxu0
        %v679 = vadd.f32 %v590, %v678
        %v680 = vpop.f32.mrf.mxu0
        %681 = vmatprep.mubr.f32.mxu0 %v308
        %682 = vmatmul.mubr.f32.gmra.mxu0 %v246
        %v683 = vpop.f32.mrf.mxu0
        %v684 = vadd.f32 %v590, %v683
        %v685 = vpop.f32.mrf.mxu0
        %686 = vmatprep.mubr.f32.mxu0 %v311
        %687 = vmatmul.mubr.f32.gmra.mxu0 %v248
        %v688 = vpop.f32.mrf.mxu0
        %v689 = vadd.f32 %v590, %v688
        %v690 = vpop.f32.mrf.mxu0
        %691 = vmatprep.mubr.f32.mxu0 %v313
        %692 = vmatmul.mubr.f32.gmra.mxu0 %v249
        %v693 = vpop.f32.mrf.mxu0
        %v694 = vadd.f32 %v590, %v693
        %v695 = vpop.f32.mrf.mxu0
        %696 = vmatprep.mubr.f32.mxu0 %v316
        %697 = vmatmul.mubr.f32.gmra.mxu0 %v251
        %v698 = vpop.f32.mrf.mxu0
        %v699 = vadd.f32 %v590, %v698
        %v700 = vpop.f32.mrf.mxu0
        %701 = vmatprep.mubr.f32.mxu0 %v318
        %702 = vmatmul.mubr.f32.gmra.mxu0 %v252
        %v703 = vpop.f32.mrf.mxu0
        %v704 = vadd.f32 %v590, %v703
        %v705 = vpop.f32.mrf.mxu0
        %706 = vmatprep.mubr.f32.mxu0 %v321
        %707 = vmatmul.mubr.f32.gmra.mxu0 %v254
        %v708 = vpop.f32.mrf.mxu0
        %v709 = vadd.f32 %v590, %v708
        %v710 = vpop.f32.mrf.mxu0
        %711 = vmatprep.mubr.f32.mxu0 %v323
        %712 = vmatmul.mubr.f32.gmra.mxu0 %v255
        %v713 = vpop.f32.mrf.mxu0
        %v714 = vadd.f32 %v590, %v713
        %v715 = vpop.f32.mrf.mxu0
        %716 = vmatprep.mubr.f32.mxu0 %v326
        %717 = vmatmul.mubr.f32.gmra.mxu0 %v257
        %v718 = vpop.f32.mrf.mxu0
        %v719 = vadd.f32 %v590, %v718
        %v720 = vpop.f32.mrf.mxu0
        %721 = vmatprep.mubr.f32.mxu0 %v328
        %722 = vmatmul.mubr.f32.gmra.mxu0 %v258
        %v723 = vpop.f32.mrf.mxu0
        %v724 = vadd.f32 %v590, %v723
        %v725 = vpop.f32.mrf.mxu0
        %726 = vmatprep.mubr.f32.mxu0 %v331
        %727 = vmatmul.mubr.f32.gmra.mxu0 %v260
        %v728 = vpop.f32.mrf.mxu0
        %v729 = vadd.f32 %v590, %v728
        %v730 = vpop.f32.mrf.mxu0
        %731 = vmatprep.mubr.f32.mxu0 %v333
        %732 = vmatmul.mubr.f32.gmra.mxu0 %v261
        %v733 = vpop.f32.mrf.mxu0
        %v734 = vadd.f32 %v590, %v733
        %v735 = vpop.f32.mrf.mxu0
        %736 = vdwg.mxu0
        %737 = vmatprep.subr.mxu0 0.0
        %738 = vmatpush1.msra.mxu0 %v488
        %739 = vmatprep.subr.mxu0 0.0
        %740 = vmatpush1.msra.mxu0 %v487
        %741 = vmatprep.subr.mxu0 0.0
        %742 = vmatpush1.msra.mxu0 %v486
        %743 = vmatprep.subr.mxu0 0.0
        %744 = vmatpush1.msra.mxu0 %v485
        %745 = vmatprep.subr.mxu0 0.0
        %746 = vmatpush1.msra.mxu0 %v484
        %747 = vmatprep.subr.mxu0 0.0
        %748 = vmatpush1.msra.mxu0 %v483
        %749 = vmatprep.subr.mxu0 0.0
        %750 = vmatpush1.msra.mxu0 %v482
        %751 = vmatprep.subr.mxu0 0.0
        %752 = vmatpush1.msra.mxu0 %v481
        %753 = vmatprep.subr.mxu0 0.0
        %754 = vmatpush1.msra.mxu0 %v480
        %755 = vmatprep.subr.mxu0 0.0
        %756 = vmatpush1.msra.mxu0 %v479
        %757 = vmatprep.subr.mxu0 0.0
        %758 = vmatpush1.msra.mxu0 %v478
        %759 = vmatprep.subr.mxu0 0.0
        %760 = vmatpush1.msra.mxu0 %v477
        %761 = vmatprep.subr.mxu0 0.0
        %762 = vmatpush1.msra.mxu0 %v476
        %763 = vmatprep.subr.mxu0 0.0
        %764 = vmatpush1.msra.mxu0 %v475
        %765 = vmatprep.subr.mxu0 0.0
        %766 = vmatpush1.msra.mxu0 %v474
        %767 = vmatprep.subr.mxu0 0.0
        %768 = vmatpush1.msra.mxu0 %v473
        %769 = vmatprep.subr.mxu0 0.0
        %770 = vmatpush2.msra.mxu0 %v504
        %771 = vmatprep.subr.mxu0 0.0
        %772 = vmatpush2.msra.mxu0 %v503
        %773 = vmatprep.subr.mxu0 0.0
        %774 = vmatpush2.msra.mxu0 %v502
        %775 = vmatprep.subr.mxu0 0.0
        %776 = vmatpush2.msra.mxu0 %v501
        %777 = vmatprep.subr.mxu0 0.0
        %778 = vmatpush2.msra.mxu0 %v500
        %779 = vmatprep.subr.mxu0 0.0
        %780 = vmatpush2.msra.mxu0 %v499
        %781 = vmatprep.subr.mxu0 0.0
        %782 = vmatpush2.msra.mxu0 %v498
        %783 = vmatprep.subr.mxu0 0.0
        %784 = vmatpush2.msra.mxu0 %v497
        %785 = vmatprep.subr.mxu0 0.0
        %786 = vmatpush2.msra.mxu0 %v496
        %787 = vmatprep.subr.mxu0 0.0
        %788 = vmatpush2.msra.mxu0 %v495
        %789 = vmatprep.subr.mxu0 0.0
        %790 = vmatpush2.msra.mxu0 %v494
        %791 = vmatprep.subr.mxu0 0.0
        %792 = vmatpush2.msra.mxu0 %v493
        %793 = vmatprep.subr.mxu0 0.0
        %794 = vmatpush2.msra.mxu0 %v492
        %795 = vmatprep.subr.mxu0 0.0
        %796 = vmatpush2.msra.mxu0 %v491
        %797 = vmatprep.subr.mxu0 0.0
        %798 = vmatpush2.msra.mxu0 %v490
        %799 = vmatprep.subr.mxu0 0.0
        %800 = vmatpush2.msra.mxu0 %v489
        %801 = vmatprep.mubr.f32.mxu0 %v242
        %802 = vmatmul.mubr.f32.gmra.mxu0 %v353
        %v803 = vpop.f32.mrf.mxu0
        %v804 = vadd.f32 %v659, %v803
        %v805 = vpop.f32.mrf.mxu0
        %806 = vmatprep.mubr.f32.mxu0 %v243
        %807 = vmatmul.mubr.f32.gmra.mxu0 %v355
        %v808 = vpop.f32.mrf.mxu0
        %v809 = vadd.f32 %v664, %v808
        %v810 = vpop.f32.mrf.mxu0
        %811 = vmatprep.mubr.f32.mxu0 %v245
        %812 = vmatmul.mubr.f32.gmra.mxu0 %v358
        %v813 = vpop.f32.mrf.mxu0
        %v814 = vadd.f32 %v669, %v813
        %v815 = vpop.f32.mrf.mxu0
        %816 = vmatprep.mubr.f32.mxu0 %v246
        %817 = vmatmul.mubr.f32.gmra.mxu0 %v360
        %v818 = vpop.f32.mrf.mxu0
        %v819 = vadd.f32 %v674, %v818
        %v820 = vpop.f32.mrf.mxu0
        %821 = vmatprep.mubr.f32.mxu0 %v248
        %822 = vmatmul.mubr.f32.gmra.mxu0 %v363
        %v823 = vpop.f32.mrf.mxu0
        %v824 = vadd.f32 %v679, %v823
        %v825 = vpop.f32.mrf.mxu0
        %826 = vmatprep.mubr.f32.mxu0 %v249
        %827 = vmatmul.mubr.f32.gmra.mxu0 %v365
        %v828 = vpop.f32.mrf.mxu0
        %v829 = vadd.f32 %v684, %v828
        %v830 = vpop.f32.mrf.mxu0
        %831 = vmatprep.mubr.f32.mxu0 %v251
        %832 = vmatmul.mubr.f32.gmra.mxu0 %v368
        %v833 = vpop.f32.mrf.mxu0
        %v834 = vadd.f32 %v689, %v833
        %v835 = vpop.f32.mrf.mxu0
        %836 = vmatprep.mubr.f32.mxu0 %v252
        %837 = vmatmul.mubr.f32.gmra.mxu0 %v370
        %v838 = vpop.f32.mrf.mxu0
        %v839 = vadd.f32 %v694, %v838
        %v840 = vpop.f32.mrf.mxu0
        %841 = vmatprep.mubr.f32.mxu0 %v254
        %842 = vmatmul.mubr.f32.gmra.mxu0 %v373
        %v843 = vpop.f32.mrf.mxu0
        %v844 = vadd.f32 %v699, %v843
        %v845 = vpop.f32.mrf.mxu0
        %846 = vmatprep.mubr.f32.mxu0 %v255
        %847 = vmatmul.mubr.f32.gmra.mxu0 %v375
        %v848 = vpop.f32.mrf.mxu0
        %v849 = vadd.f32 %v704, %v848
        %v850 = vpop.f32.mrf.mxu0
        %851 = vmatprep.mubr.f32.mxu0 %v257
        %852 = vmatmul.mubr.f32.gmra.mxu0 %v378
        %v853 = vpop.f32.mrf.mxu0
        %v854 = vadd.f32 %v709, %v853
        %v855 = vpop.f32.mrf.mxu0
        %856 = vmatprep.mubr.f32.mxu0 %v258
        %857 = vmatmul.mubr.f32.gmra.mxu0 %v380
        %v858 = vpop.f32.mrf.mxu0
        %v859 = vadd.f32 %v714, %v858
        %v860 = vpop.f32.mrf.mxu0
        %861 = vmatprep.mubr.f32.mxu0 %v260
        %862 = vmatmul.mubr.f32.gmra.mxu0 %v383
        %v863 = vpop.f32.mrf.mxu0
        %v864 = vadd.f32 %v719, %v863
        %v865 = vpop.f32.mrf.mxu0
        %866 = vmatprep.mubr.f32.mxu0 %v261
        %867 = vmatmul.mubr.f32.gmra.mxu0 %v385
        %v868 = vpop.f32.mrf.mxu0
        %v869 = vadd.f32 %v724, %v868
        %v870 = vpop.f32.mrf.mxu0
        %871 = vmatprep.mubr.f32.mxu0 %v263
        %872 = vmatmul.mubr.f32.gmra.mxu0 %v388
        %v873 = vpop.f32.mrf.mxu0
        %v874 = vadd.f32 %v729, %v873
        %v875 = vpop.f32.mrf.mxu0
        %876 = vmatprep.mubr.f32.mxu0 %v264
        %877 = vmatmul.mubr.f32.gmra.mxu0 %v390
        %v878 = vpop.f32.mrf.mxu0
        %v879 = vadd.f32 %v734, %v878
        %v880 = vpop.f32.mrf.mxu0
        %881 = vdwg.mxu0
        %882 = vmatprep.subr.mxu0 0.0
        %883 = vmatpush1.msra.mxu0 %v520
        %884 = vmatprep.subr.mxu0 0.0
        %885 = vmatpush1.msra.mxu0 %v519
        %886 = vmatprep.subr.mxu0 0.0
        %887 = vmatpush1.msra.mxu0 %v518
        %888 = vmatprep.subr.mxu0 0.0
        %889 = vmatpush1.msra.mxu0 %v517
        %890 = vmatprep.subr.mxu0 0.0
        %891 = vmatpush1.msra.mxu0 %v516
        %892 = vmatprep.subr.mxu0 0.0
        %893 = vmatpush1.msra.mxu0 %v515
        %894 = vmatprep.subr.mxu0 0.0
        %895 = vmatpush1.msra.mxu0 %v514
        %896 = vmatprep.subr.mxu0 0.0
        %897 = vmatpush1.msra.mxu0 %v513
        %898 = vmatprep.subr.mxu0 0.0
        %899 = vmatpush1.msra.mxu0 %v512
        %900 = vmatprep.subr.mxu0 0.0
        %901 = vmatpush1.msra.mxu0 %v511
        %902 = vmatprep.subr.mxu0 0.0
        %903 = vmatpush1.msra.mxu0 %v510
        %904 = vmatprep.subr.mxu0 0.0
        %905 = vmatpush1.msra.mxu0 %v509
        %906 = vmatprep.subr.mxu0 0.0
        %907 = vmatpush1.msra.mxu0 %v508
        %908 = vmatprep.subr.mxu0 0.0
        %909 = vmatpush1.msra.mxu0 %v507
        %910 = vmatprep.subr.mxu0 0.0
        %911 = vmatpush1.msra.mxu0 %v506
        %912 = vmatprep.subr.mxu0 0.0
        %913 = vmatpush1.msra.mxu0 %v505
        %914 = vmatprep.subr.mxu0 0.0
        %915 = vmatpush2.msra.mxu0 %v536
        %916 = vmatprep.subr.mxu0 0.0
        %917 = vmatpush2.msra.mxu0 %v535
        %918 = vmatprep.subr.mxu0 0.0
        %919 = vmatpush2.msra.mxu0 %v534
        %920 = vmatprep.subr.mxu0 0.0
        %921 = vmatpush2.msra.mxu0 %v533
        %922 = vmatprep.subr.mxu0 0.0
        %923 = vmatpush2.msra.mxu0 %v532
        %924 = vmatprep.subr.mxu0 0.0
        %925 = vmatpush2.msra.mxu0 %v531
        %926 = vmatprep.subr.mxu0 0.0
        %927 = vmatpush2.msra.mxu0 %v530
        %928 = vmatprep.subr.mxu0 0.0
        %929 = vmatpush2.msra.mxu0 %v529
        %930 = vmatprep.subr.mxu0 0.0
        %931 = vmatpush2.msra.mxu0 %v528
        %932 = vmatprep.subr.mxu0 0.0
        %933 = vmatpush2.msra.mxu0 %v527
        %934 = vmatprep.subr.mxu0 0.0
        %935 = vmatpush2.msra.mxu0 %v526
        %936 = vmatprep.subr.mxu0 0.0
        %937 = vmatpush2.msra.mxu0 %v525
        %938 = vmatprep.subr.mxu0 0.0
        %939 = vmatpush2.msra.mxu0 %v524
        %940 = vmatprep.subr.mxu0 0.0
        %941 = vmatpush2.msra.mxu0 %v523
        %942 = vmatprep.subr.mxu0 0.0
        %943 = vmatpush2.msra.mxu0 %v522
        %944 = vmatprep.subr.mxu0 0.0
        %945 = vmatpush2.msra.mxu0 %v521
        %946 = vmatprep.mubr.f32.mxu0 %v358
        %947 = vmatmul.mubr.f32.gmra.mxu0 %v301
        %v948 = vpop.f32.mrf.mxu0
        %v949 = vadd.f32 %v804, %v948
        %v950 = vpop.f32.mrf.mxu0
        %951 = vmatprep.mubr.f32.mxu0 %v360
        %952 = vmatmul.mubr.f32.gmra.mxu0 %v303
        %v953 = vpop.f32.mrf.mxu0
        %v954 = vadd.f32 %v809, %v953
        %v955 = vpop.f32.mrf.mxu0
        %956 = vmatprep.mubr.f32.mxu0 %v363
        %957 = vmatmul.mubr.f32.gmra.mxu0 %v306
        %v958 = vpop.f32.mrf.mxu0
        %v959 = vadd.f32 %v814, %v958
        %v960 = vpop.f32.mrf.mxu0
        %961 = vmatprep.mubr.f32.mxu0 %v365
        %962 = vmatmul.mubr.f32.gmra.mxu0 %v308
        %v963 = vpop.f32.mrf.mxu0
        %v964 = vadd.f32 %v819, %v963
        %v965 = vpop.f32.mrf.mxu0
        %966 = vmatprep.mubr.f32.mxu0 %v368
        %967 = vmatmul.mubr.f32.gmra.mxu0 %v311
        %v968 = vpop.f32.mrf.mxu0
        %v969 = vadd.f32 %v824, %v968
        %v970 = vpop.f32.mrf.mxu0
        %971 = vmatprep.mubr.f32.mxu0 %v370
        %972 = vmatmul.mubr.f32.gmra.mxu0 %v313
        %v973 = vpop.f32.mrf.mxu0
        %v974 = vadd.f32 %v829, %v973
        %v975 = vpop.f32.mrf.mxu0
        %976 = vmatprep.mubr.f32.mxu0 %v373
        %977 = vmatmul.mubr.f32.gmra.mxu0 %v316
        %v978 = vpop.f32.mrf.mxu0
        %v979 = vadd.f32 %v834, %v978
        %v980 = vpop.f32.mrf.mxu0
        %981 = vmatprep.mubr.f32.mxu0 %v375
        %982 = vmatmul.mubr.f32.gmra.mxu0 %v318
        %v983 = vpop.f32.mrf.mxu0
        %v984 = vadd.f32 %v839, %v983
        %v985 = vpop.f32.mrf.mxu0
        %986 = vmatprep.mubr.f32.mxu0 %v378
        %987 = vmatmul.mubr.f32.gmra.mxu0 %v321
        %v988 = vpop.f32.mrf.mxu0
        %v989 = vadd.f32 %v844, %v988
        %v990 = vpop.f32.mrf.mxu0
        %991 = vmatprep.mubr.f32.mxu0 %v380
        %992 = vmatmul.mubr.f32.gmra.mxu0 %v323
        %v993 = vpop.f32.mrf.mxu0
        %v994 = vadd.f32 %v849, %v993
        %v995 = vpop.f32.mrf.mxu0
        %996 = vmatprep.mubr.f32.mxu0 %v383
        %997 = vmatmul.mubr.f32.gmra.mxu0 %v326
        %v998 = vpop.f32.mrf.mxu0
        %v999 = vadd.f32 %v854, %v998
        %v1000 = vpop.f32.mrf.mxu0
        %1001 = vmatprep.mubr.f32.mxu0 %v385
        %1002 = vmatmul.mubr.f32.gmra.mxu0 %v328
        %v1003 = vpop.f32.mrf.mxu0
        %v1004 = vadd.f32 %v859, %v1003
        %v1005 = vpop.f32.mrf.mxu0
        %1006 = vmatprep.mubr.f32.mxu0 %v388
        %1007 = vmatmul.mubr.f32.gmra.mxu0 %v331
        %v1008 = vpop.f32.mrf.mxu0
        %v1009 = vadd.f32 %v864, %v1008
        %v1010 = vpop.f32.mrf.mxu0
        %1011 = vmatprep.mubr.f32.mxu0 %v390
        %1012 = vmatmul.mubr.f32.gmra.mxu0 %v333
        %v1013 = vpop.f32.mrf.mxu0
        %v1014 = vadd.f32 %v869, %v1013
        %v1015 = vpop.f32.mrf.mxu0
        %1016 = vmatprep.mubr.f32.mxu0 %v419
        %1017 = vmatmul.mubr.f32.gmra.mxu0 %v412
        %v1018 = vpop.f32.mrf.mxu0
        %v1019 = vadd.f32 %v874, %v1018
        %v1020 = vpop.f32.mrf.mxu0
        %1021 = vmatprep.mubr.f32.mxu0 %v421
        %1022 = vmatmul.mubr.f32.gmra.mxu0 %v414
        %v1023 = vpop.f32.mrf.mxu0
        %v1024 = vadd.f32 %v879, %v1023
        %v1025 = vpop.f32.mrf.mxu0
        %1026 = vdwg.mxu0
        %1027 = vmatprep.subr.mxu0 0.0
        %1028 = vmatpush1.msra.mxu0 %v552
        %1029 = vmatprep.subr.mxu0 0.0
        %1030 = vmatpush1.msra.mxu0 %v551
        %1031 = vmatprep.subr.mxu0 0.0
        %1032 = vmatpush1.msra.mxu0 %v550
        %1033 = vmatprep.subr.mxu0 0.0
        %1034 = vmatpush1.msra.mxu0 %v549
        %1035 = vmatprep.subr.mxu0 0.0
        %1036 = vmatpush1.msra.mxu0 %v548
        %1037 = vmatprep.subr.mxu0 0.0
        %1038 = vmatpush1.msra.mxu0 %v547
        %1039 = vmatprep.subr.mxu0 0.0
        %1040 = vmatpush1.msra.mxu0 %v546
        %1041 = vmatprep.subr.mxu0 0.0
        %1042 = vmatpush1.msra.mxu0 %v545
        %1043 = vmatprep.subr.mxu0 0.0
        %1044 = vmatpush1.msra.mxu0 %v544
        %1045 = vmatprep.subr.mxu0 0.0
        %1046 = vmatpush1.msra.mxu0 %v543
        %1047 = vmatprep.subr.mxu0 0.0
        %1048 = vmatpush1.msra.mxu0 %v542
        %1049 = vmatprep.subr.mxu0 0.0
        %1050 = vmatpush1.msra.mxu0 %v541
        %1051 = vmatprep.subr.mxu0 0.0
        %1052 = vmatpush1.msra.mxu0 %v540
        %1053 = vmatprep.subr.mxu0 0.0
        %1054 = vmatpush1.msra.mxu0 %v539
        %1055 = vmatprep.subr.mxu0 0.0
        %1056 = vmatpush1.msra.mxu0 %v538
        %1057 = vmatprep.subr.mxu0 0.0
        %1058 = vmatpush1.msra.mxu0 %v537
        %1059 = vmatprep.subr.mxu0 0.0
        %1060 = vmatpush2.msra.mxu0 %v568
        %1061 = vmatprep.subr.mxu0 0.0
        %1062 = vmatpush2.msra.mxu0 %v567
        %1063 = vmatprep.subr.mxu0 0.0
        %1064 = vmatpush2.msra.mxu0 %v566
        %1065 = vmatprep.subr.mxu0 0.0
        %1066 = vmatpush2.msra.mxu0 %v565
        %1067 = vmatprep.subr.mxu0 0.0
        %1068 = vmatpush2.msra.mxu0 %v564
        %1069 = vmatprep.subr.mxu0 0.0
        %1070 = vmatpush2.msra.mxu0 %v563
        %1071 = vmatprep.subr.mxu0 0.0
        %1072 = vmatpush2.msra.mxu0 %v562
        %1073 = vmatprep.subr.mxu0 0.0
        %1074 = vmatpush2.msra.mxu0 %v561
        %1075 = vmatprep.subr.mxu0 0.0
        %1076 = vmatpush2.msra.mxu0 %v560
        %1077 = vmatprep.subr.mxu0 0.0
        %1078 = vmatpush2.msra.mxu0 %v559
        %1079 = vmatprep.subr.mxu0 0.0
        %1080 = vmatpush2.msra.mxu0 %v558
        %1081 = vmatprep.subr.mxu0 0.0
        %1082 = vmatpush2.msra.mxu0 %v557
        %1083 = vmatprep.subr.mxu0 0.0
        %1084 = vmatpush2.msra.mxu0 %v556
        %1085 = vmatprep.subr.mxu0 0.0
        %1086 = vmatpush2.msra.mxu0 %v555
        %1087 = vmatprep.subr.mxu0 0.0
        %1088 = vmatpush2.msra.mxu0 %v554
        %1089 = vmatprep.subr.mxu0 0.0
        %1090 = vmatpush2.msra.mxu0 %v553
        %1091 = vmatprep.mubr.f32.mxu0 %v306
        %1092 = vmatmul.mubr.f32.gmra.mxu0 %v245
        %v1093 = vpop.f32.mrf.mxu0
        %v1094 = vadd.f32 %v949, %v1093
        %v1095 = vpop.f32.mrf.mxu0
        %1096 = vmatprep.mubr.f32.mxu0 %v308
        %1097 = vmatmul.mubr.f32.gmra.mxu0 %v246
        %v1098 = vpop.f32.mrf.mxu0
        %v1099 = vadd.f32 %v954, %v1098
        %v1100 = vpop.f32.mrf.mxu0
        %1101 = vmatprep.mubr.f32.mxu0 %v311
        %1102 = vmatmul.mubr.f32.gmra.mxu0 %v248
        %v1103 = vpop.f32.mrf.mxu0
        %v1104 = vadd.f32 %v959, %v1103
        %v1105 = vpop.f32.mrf.mxu0
        %1106 = vmatprep.mubr.f32.mxu0 %v313
        %1107 = vmatmul.mubr.f32.gmra.mxu0 %v249
        %v1108 = vpop.f32.mrf.mxu0
        %v1109 = vadd.f32 %v964, %v1108
        %v1110 = vpop.f32.mrf.mxu0
        %1111 = vmatprep.mubr.f32.mxu0 %v316
        %1112 = vmatmul.mubr.f32.gmra.mxu0 %v251
        %v1113 = vpop.f32.mrf.mxu0
        %v1114 = vadd.f32 %v969, %v1113
        %v1115 = vpop.f32.mrf.mxu0
        %1116 = vmatprep.mubr.f32.mxu0 %v318
        %1117 = vmatmul.mubr.f32.gmra.mxu0 %v252
        %v1118 = vpop.f32.mrf.mxu0
        %v1119 = vadd.f32 %v974, %v1118
        %v1120 = vpop.f32.mrf.mxu0
        %1121 = vmatprep.mubr.f32.mxu0 %v321
        %1122 = vmatmul.mubr.f32.gmra.mxu0 %v254
        %v1123 = vpop.f32.mrf.mxu0
        %v1124 = vadd.f32 %v979, %v1123
        %v1125 = vpop.f32.mrf.mxu0
        %1126 = vmatprep.mubr.f32.mxu0 %v323
        %1127 = vmatmul.mubr.f32.gmra.mxu0 %v255
        %v1128 = vpop.f32.mrf.mxu0
        %v1129 = vadd.f32 %v984, %v1128
        %v1130 = vpop.f32.mrf.mxu0
        %1131 = vmatprep.mubr.f32.mxu0 %v326
        %1132 = vmatmul.mubr.f32.gmra.mxu0 %v257
        %v1133 = vpop.f32.mrf.mxu0
        %v1134 = vadd.f32 %v989, %v1133
        %v1135 = vpop.f32.mrf.mxu0
        %1136 = vmatprep.mubr.f32.mxu0 %v328
        %1137 = vmatmul.mubr.f32.gmra.mxu0 %v258
        %v1138 = vpop.f32.mrf.mxu0
        %v1139 = vadd.f32 %v994, %v1138
        %v1140 = vpop.f32.mrf.mxu0
        %1141 = vmatprep.mubr.f32.mxu0 %v331
        %1142 = vmatmul.mubr.f32.gmra.mxu0 %v260
        %v1143 = vpop.f32.mrf.mxu0
        %v1144 = vadd.f32 %v999, %v1143
        %v1145 = vpop.f32.mrf.mxu0
        %1146 = vmatprep.mubr.f32.mxu0 %v333
        %1147 = vmatmul.mubr.f32.gmra.mxu0 %v261
        %v1148 = vpop.f32.mrf.mxu0
        %v1149 = vadd.f32 %v1004, %v1148
        %v1150 = vpop.f32.mrf.mxu0
        %1151 = vmatprep.mubr.f32.mxu0 %v412
        %1152 = vmatmul.mubr.f32.gmra.mxu0 %v263
        %v1153 = vpop.f32.mrf.mxu0
        %v1154 = vadd.f32 %v1009, %v1153
        %v1155 = vpop.f32.mrf.mxu0
        %1156 = vmatprep.mubr.f32.mxu0 %v414
        %1157 = vmatmul.mubr.f32.gmra.mxu0 %v264
        %v1158 = vpop.f32.mrf.mxu0
        %v1159 = vadd.f32 %v1014, %v1158
        %v1160 = vpop.f32.mrf.mxu0
        %1161 = vmatprep.mubr.f32.mxu0 %v429
        %1162 = vmatmul.mubr.f32.gmra.mxu0 %v266
        %v1163 = vpop.f32.mrf.mxu0
        %v1164 = vadd.f32 %v1019, %v1163
        %v1165 = vpop.f32.mrf.mxu0
        %1166 = vmatprep.mubr.f32.mxu0 %v431
        %1167 = vmatmul.mubr.f32.gmra.mxu0 %v267
        %v1168 = vpop.f32.mrf.mxu0
        %v1169 = vadd.f32 %v1024, %v1168
        %v1170 = vpop.f32.mrf.mxu0
        %1171 = vdwg.mxu0
        %1172 = vmatprep.subr.mxu0 0.0
        %1173 = vmatpush1.msra.mxu0 %v584
        %1174 = vmatprep.subr.mxu0 0.0
        %1175 = vmatpush1.msra.mxu0 %v583
        %1176 = vmatprep.subr.mxu0 0.0
        %1177 = vmatpush1.msra.mxu0 %v582
        %1178 = vmatprep.subr.mxu0 0.0
        %1179 = vmatpush1.msra.mxu0 %v581
        %1180 = vmatprep.subr.mxu0 0.0
        %1181 = vmatpush1.msra.mxu0 %v580
        %1182 = vmatprep.subr.mxu0 0.0
        %1183 = vmatpush1.msra.mxu0 %v579
        %1184 = vmatprep.subr.mxu0 0.0
        %1185 = vmatpush1.msra.mxu0 %v578
        %1186 = vmatprep.subr.mxu0 0.0
        %1187 = vmatpush1.msra.mxu0 %v577
        %1188 = vmatprep.subr.mxu0 0.0
        %1189 = vmatpush1.msra.mxu0 %v576
        %1190 = vmatprep.subr.mxu0 0.0
        %1191 = vmatpush1.msra.mxu0 %v575
        %1192 = vmatprep.subr.mxu0 0.0
        %1193 = vmatpush1.msra.mxu0 %v574
        %1194 = vmatprep.subr.mxu0 0.0
        %1195 = vmatpush1.msra.mxu0 %v573
        %1196 = vmatprep.subr.mxu0 0.0
        %1197 = vmatpush1.msra.mxu0 %v572
        %1198 = vmatprep.subr.mxu0 0.0
        %1199 = vmatpush1.msra.mxu0 %v571
        %1200 = vmatprep.subr.mxu0 0.0
        %1201 = vmatpush1.msra.mxu0 %v570
        %1202 = vmatprep.subr.mxu0 0.0
        %1203 = vmatpush1.msra.mxu0 %v569
        %1204 = vmatprep.subr.mxu0 0.0
        %1205 = vmatpush2.msra.mxu0 0.0
        %1206 = vmatprep.subr.mxu0 0.0
        %1207 = vmatpush2.msra.mxu0 0.0
        %1208 = vmatprep.subr.mxu0 0.0
        %1209 = vmatpush2.msra.mxu0 0.0
        %1210 = vmatprep.subr.mxu0 0.0
        %1211 = vmatpush2.msra.mxu0 0.0
        %1212 = vmatprep.subr.mxu0 0.0
        %1213 = vmatpush2.msra.mxu0 0.0
        %1214 = vmatprep.subr.mxu0 0.0
        %1215 = vmatpush2.msra.mxu0 0.0
        %1216 = vmatprep.subr.mxu0 0.0
        %1217 = vmatpush2.msra.mxu0 0.0
        %1218 = vmatprep.subr.mxu0 0.0
        %1219 = vmatpush2.msra.mxu0 0.0
        %1220 = vmatprep.subr.mxu0 0.0
        %1221 = vmatpush2.msra.mxu0 0.0
        %1222 = vmatprep.subr.mxu0 0.0
        %1223 = vmatpush2.msra.mxu0 0.0
        %1224 = vmatprep.subr.mxu0 0.0
        %1225 = vmatpush2.msra.mxu0 0.0
        %1226 = vmatprep.subr.mxu0 0.0
        %1227 = vmatpush2.msra.mxu0 0.0
        %1228 = vmatprep.subr.mxu0 0.0
        %1229 = vmatpush2.msra.mxu0 0.0
        %1230 = vmatprep.subr.mxu0 0.0
        %1231 = vmatpush2.msra.mxu0 0.0
        %1232 = vmatprep.subr.mxu0 0.0
        %1233 = vmatpush2.msra.mxu0 0.0
        %1234 = vmatprep.subr.mxu0 0.0
        %1235 = vmatpush2.msra.mxu0 0.0
        %1236 = vmatprep.mubr.f32.mxu0 0.0
        %1237 = vmatmul.mubr.f32.gmra.mxu0 %v363
        %v1238 = vpop.f32.mrf.mxu0
        %v1239 = vadd.f32 %v1094, %v1238
        %v1240 = vpop.f32.mrf.mxu0
        %1241 = vmatprep.mubr.f32.mxu0 0.0
        %1242 = vmatmul.mubr.f32.gmra.mxu0 %v365
        %v1243 = vpop.f32.mrf.mxu0
        %v1244 = vadd.f32 %v1099, %v1243
        %v1245 = vpop.f32.mrf.mxu0
        %1246 = vmatprep.mubr.f32.mxu0 0.0
        %1247 = vmatmul.mubr.f32.gmra.mxu0 %v368
        %v1248 = vpop.f32.mrf.mxu0
        %v1249 = vadd.f32 %v1104, %v1248
        %v1250 = vpop.f32.mrf.mxu0
        %1251 = vmatprep.mubr.f32.mxu0 0.0
        %1252 = vmatmul.mubr.f32.gmra.mxu0 %v370
        %v1253 = vpop.f32.mrf.mxu0
        %v1254 = vadd.f32 %v1109, %v1253
        %v1255 = vpop.f32.mrf.mxu0
        %1256 = vmatprep.mubr.f32.mxu0 0.0
        %1257 = vmatmul.mubr.f32.gmra.mxu0 %v373
        %v1258 = vpop.f32.mrf.mxu0
        %v1259 = vadd.f32 %v1114, %v1258
        %v1260 = vpop.f32.mrf.mxu0
        %1261 = vmatprep.mubr.f32.mxu0 0.0
        %1262 = vmatmul.mubr.f32.gmra.mxu0 %v375
        %v1263 = vpop.f32.mrf.mxu0
        %v1264 = vadd.f32 %v1119, %v1263
        %v1265 = vpop.f32.mrf.mxu0
        %1266 = vmatprep.mubr.f32.mxu0 0.0
        %1267 = vmatmul.mubr.f32.gmra.mxu0 %v378
        %v1268 = vpop.f32.mrf.mxu0
        %v1269 = vadd.f32 %v1124, %v1268
        %v1270 = vpop.f32.mrf.mxu0
        %1271 = vmatprep.mubr.f32.mxu0 0.0
        %1272 = vmatmul.mubr.f32.gmra.mxu0 %v380
        %v1273 = vpop.f32.mrf.mxu0
        %v1274 = vadd.f32 %v1129, %v1273
        %v1275 = vpop.f32.mrf.mxu0
        %1276 = vmatprep.mubr.f32.mxu0 0.0
        %1277 = vmatmul.mubr.f32.gmra.mxu0 %v383
        %v1278 = vpop.f32.mrf.mxu0
        %v1279 = vadd.f32 %v1134, %v1278
        %v1280 = vpop.f32.mrf.mxu0
        %1281 = vmatprep.mubr.f32.mxu0 0.0
        %1282 = vmatmul.mubr.f32.gmra.mxu0 %v385
        %v1283 = vpop.f32.mrf.mxu0
        %v1284 = vadd.f32 %v1139, %v1283
        %v1285 = vpop.f32.mrf.mxu0
        %1286 = vmatprep.mubr.f32.mxu0 0.0
        %1287 = vmatmul.mubr.f32.gmra.mxu0 %v388
        %v1288 = vpop.f32.mrf.mxu0
        %v1289 = vadd.f32 %v1144, %v1288
        %v1290 = vpop.f32.mrf.mxu0
        %1291 = vmatprep.mubr.f32.mxu0 0.0
        %1292 = vmatmul.mubr.f32.gmra.mxu0 %v390
        %v1293 = vpop.f32.mrf.mxu0
        %v1294 = vadd.f32 %v1149, %v1293
        %v1295 = vpop.f32.mrf.mxu0
        %1296 = vmatprep.mubr.f32.mxu0 0.0
        %1297 = vmatmul.mubr.f32.gmra.mxu0 %v419
        %v1298 = vpop.f32.mrf.mxu0
        %v1299 = vadd.f32 %v1154, %v1298
        %v1300 = vpop.f32.mrf.mxu0
        %1301 = vmatprep.mubr.f32.mxu0 0.0
        %1302 = vmatmul.mubr.f32.gmra.mxu0 %v421
        %v1303 = vpop.f32.mrf.mxu0
        %v1304 = vadd.f32 %v1159, %v1303
        %v1305 = vpop.f32.mrf.mxu0
        %1306 = vmatprep.mubr.f32.mxu0 0.0
        %1307 = vmatmul.mubr.f32.gmra.mxu0 %v436
        %v1308 = vpop.f32.mrf.mxu0
        %v1309 = vadd.f32 %v1164, %v1308
        %v1310 = vpop.f32.mrf.mxu0
        %1311 = vmatprep.mubr.f32.mxu0 0.0
        %1312 = vmatmul.mubr.f32.gmra.mxu0 %v438
        %v1313 = vpop.f32.mrf.mxu0
        %v1314 = vadd.f32 %v1169, %v1313
        %v1315 = vpop.f32.mrf.mxu0
        %1316 = vdwg.mxu0
        %1317 = vst [vmem:[%s221] sm:$0xff] %v1239
        %1318 = vst [vmem:[%s221 + $0x8] sm:$0xff] %v1244
        %1319 = vst [vmem:[%s221 + $0x10] sm:$0xff] %v1249
        %1320 = vst [vmem:[%s221 + $0x18] sm:$0xff] %v1254
        %1321 = vst [vmem:[%s221 + $0x20] sm:$0xff] %v1259
        %1322 = vst [vmem:[%s221 + $0x28] sm:$0xff] %v1264
        %1323 = vst [vmem:[%s221 + $0x30] sm:$0xff] %v1269
        %1324 = vst [vmem:[%s221 + $0x38] sm:$0xff] %v1274
        %1325 = vst [vmem:[%s221 + $0x40] sm:$0xff] %v1279
        %1326 = vst [vmem:[%s221 + $0x48] sm:$0xff] %v1284
        %1327 = vst [vmem:[%s221 + $0x50] sm:$0xff] %v1289
        %1328 = vst [vmem:[%s221 + $0x58] sm:$0xff] %v1294
        %1329 = vst [vmem:[%s221 + $0x60] sm:$0xff] %v1299
        %1330 = vst [vmem:[%s221 + $0x68] sm:$0xff] %v1304
        %1331 = vst [vmem:[%s221 + $0x70] sm:$0xff] %v1309
        %1332 = vst [vmem:[%s221 + $0x78] sm:$0xff] %v1314
        %v1333 = vadd.f32 %v1239, %v1244
        %v1334 = vadd.f32 %v1333, %v1249
        %v1335 = vadd.f32 %v1334, %v1254
        %v1336 = vadd.f32 %v1335, %v1259
        %v1337 = vadd.f32 %v1336, %v1264
        %v1338 = vadd.f32 %v1337, %v1269
        %v1339 = vadd.f32 %v1338, %v1274
        %v1340 = vadd.f32 %v1339, %v1279
        %v1341 = vadd.f32 %v1340, %v1284
        %v1342 = vadd.f32 %v1341, %v1289
        %v1343 = vadd.f32 %v1342, %v1294
        %v1344 = vadd.f32 %v1343, %v1299
        %v1345 = vadd.f32 %v1344, %v1304
        %v1346 = vadd.f32 %v1345, %v1309
        %v1347 = vadd.f32 %v1346, %v1314
        %v1348 = vrot.slane %v1347, 4
        %v1349 = vadd.f32 %v1347, %v1348
        %v1350 = vrot.slane %v1349, 2
        %v1351 = vadd.f32 %v1349, %v1350
        %v1352 = vrot.slane %v1351, 1
        %v1353 = vadd.f32 %v1351, %v1352
        %1354 = vst [vmem:[%s227] sm:$0x1] %v1353
        %v1355 = vmul.f32 %v1239, %v1239
        %v1356 = vmul.f32 %v1244, %v1244
        %v1357 = vmul.f32 %v1249, %v1249
        %v1358 = vmul.f32 %v1254, %v1254
        %v1359 = vmul.f32 %v1259, %v1259
        %v1360 = vmul.f32 %v1264, %v1264
        %v1361 = vmul.f32 %v1269, %v1269
        %v1362 = vmul.f32 %v1274, %v1274
        %v1363 = vmul.f32 %v1279, %v1279
        %v1364 = vmul.f32 %v1284, %v1284
        %v1365 = vmul.f32 %v1289, %v1289
        %v1366 = vmul.f32 %v1294, %v1294
        %v1367 = vmul.f32 %v1299, %v1299
        %v1368 = vmul.f32 %v1304, %v1304
        %v1369 = vmul.f32 %v1309, %v1309
        %v1370 = vmul.f32 %v1314, %v1314
        %v1371 = vadd.f32 %v1355, %v1356
        %v1372 = vadd.f32 %v1371, %v1357
        %v1373 = vadd.f32 %v1372, %v1358
        %v1374 = vadd.f32 %v1373, %v1359
        %v1375 = vadd.f32 %v1374, %v1360
        %v1376 = vadd.f32 %v1375, %v1361
        %v1377 = vadd.f32 %v1376, %v1362
        %v1378 = vadd.f32 %v1377, %v1363
        %v1379 = vadd.f32 %v1378, %v1364
        %v1380 = vadd.f32 %v1379, %v1365
        %v1381 = vadd.f32 %v1380, %v1366
        %v1382 = vadd.f32 %v1381, %v1367
        %v1383 = vadd.f32 %v1382, %v1368
        %v1384 = vadd.f32 %v1383, %v1369
        %v1385 = vadd.f32 %v1384, %v1370
        %v1386 = vrot.slane %v1385, 4
        %v1387 = vadd.f32 %v1385, %v1386
        %v1388 = vrot.slane %v1387, 2
        %v1389 = vadd.f32 %v1387, %v1388
        %v1390 = vrot.slane %v1389, 1
        %v1391 = vadd.f32 %v1389, %v1390
        %1392 = vst [vmem:[%s233] sm:$0x1] %v1391
        %s1393 = sand.u32 %s99, 1
        %s1394 = scalar_lea.sflag [#allocation3], %s1393
        %s1395 = sand.u32 %s99, 1
        %s1396 = smul.addr %s1395, 128
        %s1397 = scalar_lea.vmem [#allocation2], %s1396
        %s1398 = sand.u32 %s23, 1
        %s1399 = scalar_lea.sflag [#allocation5], %s1398
        %s1400 = sand.u32 %s125, 1
        %s1401 = scalar_lea.vmem [#allocation4], %s1400
        %s1402 = sand.u32 %s23, 1
        %s1403 = scalar_lea.sflag [#allocation5], %s1402
        %s1404 = sand.u32 %s151, 1
        %s1405 = scalar_lea.vmem [#allocation6], %s1404
        // Predicated region
        $region33: #{tpu_custom_call.1} parent=31 // pred_check
          %p1406 = pneg %p109
        $region34: #{tpu_custom_call.1} parent=31 // pred_check_branch
          %1408 = sbr.rel (%p1406) target = $region36
        $region35: #{tpu_custom_call.1} parent=31 // pred_region
          %s1410 = ssub.s32 2048, 2048
          %1411 = vsyncadd %s1394, %s1410
          %s1412 = smul.addr %s23, 16
          %s1413 = smul.addr %s1412, 128
          %s1414 = scalar_lea.hbm %s3, %s1413
          %s1415 = sshll.u32 %s1397, 4
          %s1416 = int_to_ptr.vmem [resolvable:$true] %s1415
          %1421 = dma.vmem_to_hbm [thread:$0]  %s1416, 2048, %s1414, %s1394, 128, 128, 8
        $region36: #{tpu_custom_call.1} parent=31 // pred_fallthru
          _
        // Predicated region
        $region37: #{tpu_custom_call.1} parent=31 // pred_check
          %p1422 = pneg %p135
        $region38: #{tpu_custom_call.1} parent=31 // pred_check_branch
          %1424 = sbr.rel (%p1422) target = $region40
        $region39: #{tpu_custom_call.1} parent=31 // pred_region
          %s1426 = ssub.s32 16, 16
          %1427 = vsyncadd %s1399, %s1426
          %s1428 = smul.addr %s23, 16
          %s1429 = scalar_lea.hbm %s4, %s1428
          %s1431 = sshll.u32 %s1401, 4
          %s1432 = int_to_ptr.vmem [resolvable:$true] %s1431
          %1434 = dma.vmem_to_hbm [thread:$0]  %s1432, 16, %s1429, %s1399
        $region40: #{tpu_custom_call.1} parent=31 // pred_fallthru
          _
        // Predicated region
        $region41: #{tpu_custom_call.1} parent=31 // pred_check
          %p1435 = pneg %p161
        $region42: #{tpu_custom_call.1} parent=31 // pred_check_branch
          %1437 = sbr.rel (%p1435) target = $region44
        $region43: #{tpu_custom_call.1} parent=31 // pred_region
          %s1439 = ssub.s32 16, 16
          %1440 = vsyncadd %s1403, %s1439
          %s1441 = smul.addr %s23, 16
          %s1442 = scalar_lea.hbm %s5, %s1441
          %s1444 = sshll.u32 %s1405, 4
          %s1445 = int_to_ptr.vmem [resolvable:$true] %s1444
          %1447 = dma.vmem_to_hbm [thread:$0]  %s1445, 16, %s1442, %s1403
        $region44: #{tpu_custom_call.1} parent=31 // pred_fallthru
          _
      $region32: #{tpu_custom_call.1} parent=5 // pred_fallthru
        _
      %p1448 = scmp.le.s32.totalorder 2, %s18
      // Predicated region
      $region45: #{tpu_custom_call.1} parent=5 // pred_check
        %p1449 = pneg %p1448
      $region46: #{tpu_custom_call.1} parent=5 // pred_check_branch
        %1451 = sbr.rel (%p1449) target = $region48
      $region47: #{tpu_custom_call.1} parent=5 // pred_region
        %s1452 = ssub.s32 %s18, 2
        // Predicated region
        $region49: #{tpu_custom_call.1} parent=47 // pred_check
          %p1453 = pneg %p115
        $region50: #{tpu_custom_call.1} parent=47 // pred_check_branch
          %1455 = sbr.rel (%p1453) target = $region52
        $region51: #{tpu_custom_call.1} parent=47 // pred_region
          %s1456 = sand.u32 %s100, 1
          %s1457 = scalar_lea.sflag [#allocation3], %s1456
          %s1458 = sand.u32 %s100, 1
          %s1459 = smul.addr %s1458, 128
          %s1460 = scalar_lea.vmem [#allocation2], %s1459
          %1461 = dma.done %s1457, 2048
        $region52: #{tpu_custom_call.1} parent=47 // pred_fallthru
          _
        // Predicated region
        $region53: #{tpu_custom_call.1} parent=47 // pred_check
          %p1462 = pneg %p141
        $region54: #{tpu_custom_call.1} parent=47 // pred_check_branch
          %1464 = sbr.rel (%p1462) target = $region56
        $region55: #{tpu_custom_call.1} parent=47 // pred_region
          %s1465 = sand.u32 %s24, 1
          %s1466 = scalar_lea.sflag [#allocation5], %s1465
          %s1467 = sand.u32 %s126, 1
          %s1468 = scalar_lea.vmem [#allocation4], %s1467
          %1469 = dma.done %s1466, 16
        $region56: #{tpu_custom_call.1} parent=47 // pred_fallthru
          _
        // Predicated region
        $region57: #{tpu_custom_call.1} parent=47 // pred_check
          %p1470 = pneg %p167
        $region58: #{tpu_custom_call.1} parent=47 // pred_check_branch
          %1472 = sbr.rel (%p1470) target = $region60
        $region59: #{tpu_custom_call.1} parent=47 // pred_region
          %s1473 = sand.u32 %s24, 1
          %s1474 = scalar_lea.sflag [#allocation5], %s1473
          %s1475 = sand.u32 %s152, 1
          %s1476 = scalar_lea.vmem [#allocation6], %s1475
          %1477 = dma.done %s1474, 16
        $region60: #{tpu_custom_call.1} parent=47 // pred_fallthru
          _
      $region48: #{tpu_custom_call.1} parent=5 // pred_fallthru
        _
    $region6: #{tpu_custom_call.1} parent=1 // loop_footer
      %s22 = sadd.s32 1, %s18
    $region7: #{tpu_custom_call.1} parent=1 // loop_footer_branch
      %17 = sbr.rel target = $region3
    $region8: #{tpu_custom_call.1} parent=1 // loop_exit
      _
    %1478 = vsyncpa [#allocation3], 1
    %s1479 = scalar_lea.sflag [#allocation3], 1
    %1480 = vsyncpa %s1479, 1
    %1481 = vsyncpa [#allocation5], 1
    %s1482 = scalar_lea.sflag [#allocation5], 1
    %1483 = vsyncpa %s1482, 1

</llo_original>
